<compile_context>
chip_gen: v7x
topology: tpu7x:2x2x1
jax: 0.10.0
libtpu: 0.0.40
codegen_flags: <defaults>
</compile_context>

<pallas_src>
import functools

import jax
import jax.numpy as jnp
from jax.experimental import pallas as pl
from jax.experimental.pallas import tpu as pltpu

LANE = 128


def _round_up(n, m):
    return ((n + m - 1) // m) * m


def mlp_kernel(x_ref,
               w1_ref, b1_ref, w2_ref, b2_ref, w3_ref, b3_ref,
               w4_ref, b4_ref, w5_ref, b5_ref,
               wh_ref, bh_ref,
               out_ref, *, action_space):
    """One batch tile: 5 tanh layers + fused (actor|critic) head.

    x_ref:   (TB, in_pad)   bf16
    wK_ref:  (in, out)      bf16   (resident across the grid)
    bK_ref:  (1, out)       f32
    out_ref: (TB, head_pad) f32    lanes [0:A) = softmax policy, lane A = value
    """

    def dense(h, w_ref, b_ref):
        return jnp.dot(h, w_ref[...], preferred_element_type=jnp.float32) + b_ref[...]

    def layer(h, w_ref, b_ref):
        # f32 accumulate + f32 tanh (EUP), cast back to bf16 for the next MXU op.
        return jnp.tanh(dense(h, w_ref, b_ref)).astype(jnp.bfloat16)

    h = layer(x_ref[...], w1_ref, b1_ref)
    h = layer(h, w2_ref, b2_ref)
    h = layer(h, w3_ref, b3_ref)
    h = layer(h, w4_ref, b4_ref)
    h = layer(h, w5_ref, b5_ref)

    # Fused head: one matmul produces [actor logits | critic value | zero pad].
    logits = dense(h, wh_ref, bh_ref)                       # (TB, head_pad) f32
    lane = jax.lax.broadcasted_iota(jnp.int32, logits.shape, 1)
    a_mask = lane < action_space

    # Masked, max-subtracted softmax over the action lanes only.
    masked = jnp.where(a_mask, logits, jnp.float32(-1e30))
    m = jnp.max(masked, axis=-1, keepdims=True)
    e = jnp.where(a_mask, jnp.exp(masked - m), jnp.float32(0.0))
    policy = e / jnp.sum(e, axis=-1, keepdims=True)

    # Critic output already sits in lane `action_space` of the fused matmul.
    value_part = jnp.where(lane == action_space, logits, jnp.float32(0.0))

    out_ref[...] = policy + value_part


def init_layer_params(key, in_features, out_features, in_pad=None, out_pad=None):
    """Mirror of init_layer: weight ~ N(0,1) row-normalized over the input dim,
    bias = 0.  Returns the (in, out) transposed weight, zero-padded and cast to
    bf16, plus an f32 bias of shape (1, out_pad)."""
    in_pad = in_features if in_pad is None else in_pad
    out_pad = out_features if out_pad is None else out_pad
    w = jax.random.normal(key, (out_features, in_features), dtype=jnp.float32)
    w = w / jnp.sqrt(jnp.sum(w * w, axis=1, keepdims=True))
    wt = jnp.pad(w.T, ((0, in_pad - in_features), (0, out_pad - out_features)))
    b = jnp.zeros((1, out_pad), dtype=jnp.float32)
    return wt.astype(jnp.bfloat16), b


def make_mlp_params(num_inputs, action_space, seed=0):
    keys = jax.random.split(jax.random.PRNGKey(seed), 7)
    in_pad = _round_up(num_inputs, LANE)
    head_pad = _round_up(action_space + 1, LANE)

    w1, b1 = init_layer_params(keys[0], num_inputs, 256, in_pad=in_pad)
    w2, b2 = init_layer_params(keys[1], 256, 512)
    w3, b3 = init_layer_params(keys[2], 512, 512)
    w4, b4 = init_layer_params(keys[3], 512, 512)
    w5, b5 = init_layer_params(keys[4], 512, 256)
    wa, _ = init_layer_params(keys[5], 256, action_space)   # (256, A) bf16
    wc, _ = init_layer_params(keys[6], 256, 1)               # (256, 1) bf16

    # Fused, lane-padded head weight: [actor | critic | zeros].
    wh = jnp.zeros((256, head_pad), jnp.bfloat16)
    wh = wh.at[:, :action_space].set(wa)
    wh = wh.at[:, action_space:action_space + 1].set(wc)
    bh = jnp.zeros((1, head_pad), jnp.float32)

    return [w1, b1, w2, b2, w3, b3, w4, b4, w5, b5, wh, bh]


def mlp_forward(x, params, num_inputs, action_space, tb=512):
    """x: (B, num_inputs) f32.  Returns (policy (B, A) f32, value (B, 1) f32)."""
    B = x.shape[0]
    in_pad = params[0].shape[0]         # padded input width (multiple of 128)
    head_pad = params[-1].shape[1]      # padded head width (multiple of 128)

    # Batch tile: multiple of 8 sublanes; shrink for tiny batches, pad B up.
    tb = min(tb, _round_up(max(B, 8), 8))
    B_pad = _round_up(B, tb)

    xp = jnp.zeros((B_pad, in_pad), jnp.bfloat16)
    xp = xp.at[:B, :num_inputs].set(x.astype(jnp.bfloat16))

    # Weights/biases: full-array blocks, constant index_map -> VMEM-resident
    # across the whole batch grid (DMA'd only once).
    param_specs = [pl.BlockSpec(p.shape, lambda i: (0, 0)) for p in params]

    out = pl.pallas_call(
        functools.partial(mlp_kernel, action_space=action_space),
        out_shape=jax.ShapeDtypeStruct((B_pad, head_pad), jnp.float32),
        grid=(B_pad // tb,),
        in_specs=[pl.BlockSpec((tb, in_pad), lambda i: (i, 0))] + param_specs,
        out_specs=pl.BlockSpec((tb, head_pad), lambda i: (i, 0)),
        compiler_params=pltpu.CompilerParams(
            dimension_semantics=("parallel",),       # megacore (v7x: 2 TCs)
            vmem_limit_bytes=32 * 1024 * 1024,       # well within v5e/v6e/v7x
        ),
    )(xp, *params)

    policy = out[:B, :action_space]
    value = out[:B, action_space:action_space + 1]
    return policy, value


def ref_forward(x, params, num_inputs, action_space):
    """Pure-JAX reference performing the same bf16/f32 math."""
    w1, b1, w2, b2, w3, b3, w4, b4, w5, b5, wh, bh = params
    in_pad = w1.shape[0]
    xp = jnp.zeros((x.shape[0], in_pad), jnp.bfloat16)
    xp = xp.at[:, :num_inputs].set(x.astype(jnp.bfloat16))
    h = xp
    for w, b in ((w1, b1), (w2, b2), (w3, b3), (w4, b4), (w5, b5)):
        h = jnp.tanh(jnp.dot(h, w, preferred_element_type=jnp.float32) + b)
        h = h.astype(jnp.bfloat16)
    logits = jnp.dot(h, wh, preferred_element_type=jnp.float32) + bh
    pol = jax.nn.softmax(logits[:, :action_space], axis=1)
    val = logits[:, action_space:action_space + 1]
    return pol, val


if __name__ == "__main__":
    num_inputs = 32
    action_space = 16

    params = make_mlp_params(num_inputs, action_space, seed=0)

    key = jax.random.PRNGKey(0)
    k1, k2 = jax.random.split(key)

    # Test 1: tiny batch (single grid step, padded to the 8-row sublane tile).
    x1 = jax.random.normal(k1, (4, num_inputs), dtype=jnp.float32)
    pol1, val1 = mlp_forward(x1, params, num_inputs, action_space)
    jax.block_until_ready((pol1, val1))
    pr1, vr1 = ref_forward(x1, params, num_inputs, action_space)
    assert pol1.shape == (4, action_space) and val1.shape == (4, 1)
    assert jnp.allclose(pol1, pr1, atol=2e-2), "policy mismatch (test 1)"
    assert jnp.allclose(val1, vr1, atol=2e-2), "value mismatch (test 1)"
    assert jnp.allclose(jnp.sum(pol1, axis=1), 1.0, atol=1e-3)

    # Test 2: batch not a multiple of the tile -> multi-step grid (tb=8, grid=3).
    x2 = jax.random.normal(k2, (20, num_inputs), dtype=jnp.float32)
    pol2, val2 = mlp_forward(x2, params, num_inputs, action_space, tb=8)
    jax.block_until_ready((pol2, val2))
    pr2, vr2 = ref_forward(x2, params, num_inputs, action_space)
    assert pol2.shape == (20, action_space) and val2.shape == (20, 1)
    assert jnp.allclose(pol2, pr2, atol=2e-2), "policy mismatch (test 2)"
    assert jnp.allclose(val2, vr2, atol=2e-2), "value mismatch (test 2)"
    assert jnp.allclose(jnp.sum(pol2, axis=1), 1.0, atol=1e-3)

    print("KERNEL_OK")
</pallas_src>

<mosaic_0001>
module attributes {stable_mosaic.version = 11 : i64} {
  func.func @mlp_kernel(%arg0: i32, %arg1: memref<8x128xbf16, #tpu.memory_space<vmem>>, %arg2: memref<128x256xbf16, #tpu.memory_space<vmem>>, %arg3: memref<1x256xf32, #tpu.memory_space<vmem>>, %arg4: memref<256x512xbf16, #tpu.memory_space<vmem>>, %arg5: memref<1x512xf32, #tpu.memory_space<vmem>>, %arg6: memref<512x512xbf16, #tpu.memory_space<vmem>>, %arg7: memref<1x512xf32, #tpu.memory_space<vmem>>, %arg8: memref<512x512xbf16, #tpu.memory_space<vmem>>, %arg9: memref<1x512xf32, #tpu.memory_space<vmem>>, %arg10: memref<512x256xbf16, #tpu.memory_space<vmem>>, %arg11: memref<1x256xf32, #tpu.memory_space<vmem>>, %arg12: memref<256x128xbf16, #tpu.memory_space<vmem>>, %arg13: memref<1x128xf32, #tpu.memory_space<vmem>>, %arg14: memref<8x128xf32, #tpu.memory_space<vmem>>) attributes {dimension_semantics = [#tpu.dimension_semantics<parallel>], iteration_bounds = array<i64: 1>, scalar_prefetch = 0 : i64, scratch_operands = 0 : i64, tpu.core_type = #tpu.core_type<tc>, window_params = [{transform_indices = @transform_0, window_bounds = array<i64: 8, 128>}, {pipeline_mode = #tpu.pipeline_mode<synchronous>, transform_indices = @transform_1, window_bounds = array<i64: 128, 256>}, {pipeline_mode = #tpu.pipeline_mode<synchronous>, transform_indices = @transform_2, window_bounds = array<i64: 1, 256>}, {pipeline_mode = #tpu.pipeline_mode<synchronous>, transform_indices = @transform_3, window_bounds = array<i64: 256, 512>}, {pipeline_mode = #tpu.pipeline_mode<synchronous>, transform_indices = @transform_4, window_bounds = array<i64: 1, 512>}, {pipeline_mode = #tpu.pipeline_mode<synchronous>, transform_indices = @transform_5, window_bounds = array<i64: 512, 512>}, {pipeline_mode = #tpu.pipeline_mode<synchronous>, transform_indices = @transform_6, window_bounds = array<i64: 1, 512>}, {pipeline_mode = #tpu.pipeline_mode<synchronous>, transform_indices = @transform_7, window_bounds = array<i64: 512, 512>}, {pipeline_mode = #tpu.pipeline_mode<synchronous>, transform_indices = @transform_8, window_bounds = array<i64: 1, 512>}, {pipeline_mode = #tpu.pipeline_mode<synchronous>, transform_indices = @transform_9, window_bounds = array<i64: 512, 256>}, {pipeline_mode = #tpu.pipeline_mode<synchronous>, transform_indices = @transform_10, window_bounds = array<i64: 1, 256>}, {pipeline_mode = #tpu.pipeline_mode<synchronous>, transform_indices = @transform_11, window_bounds = array<i64: 256, 128>}, {pipeline_mode = #tpu.pipeline_mode<synchronous>, transform_indices = @transform_12, window_bounds = array<i64: 1, 128>}, {transform_indices = @transform_13, window_bounds = array<i64: 8, 128>}]} {
    %c0 = arith.constant 0 : index
    %c0_0 = arith.constant 0 : index
    %0 = vector.load %arg1[%c0, %c0_0] : memref<8x128xbf16, #tpu.memory_space<vmem>>, vector<8x128xbf16>
    %c0_1 = arith.constant 0 : index
    %c0_2 = arith.constant 0 : index
    %1 = vector.load %arg2[%c0_1, %c0_2] : memref<128x256xbf16, #tpu.memory_space<vmem>>, vector<128x256xbf16>
    %cst = arith.constant dense<0.000000e+00> : vector<8x256xf32>
    %2 = tpu.matmul %0, %1, %cst {dimension_numbers = #tpu.dot_dimension_numbers<[1], [0], [0], [1], [0, 0, 1, 1], [], []>} : vector<8x128xbf16>, vector<128x256xbf16>, vector<8x256xf32> -> vector<8x256xf32>
    %c0_3 = arith.constant 0 : index
    %c0_4 = arith.constant 0 : index
    %3 = vector.load %arg3[%c0_3, %c0_4] : memref<1x256xf32, #tpu.memory_space<vmem>>, vector<1x256xf32>
    %4 = vector.broadcast %3 : vector<1x256xf32> to vector<8x256xf32>
    %5 = arith.addf %2, %4 : vector<8x256xf32>
    %6 = math.tanh %5 : vector<8x256xf32>
    %7 = arith.truncf %6 : vector<8x256xf32> to vector<8x256xbf16>
    %c0_5 = arith.constant 0 : index
    %c0_6 = arith.constant 0 : index
    %8 = vector.load %arg4[%c0_5, %c0_6] : memref<256x512xbf16, #tpu.memory_space<vmem>>, vector<256x512xbf16>
    %cst_7 = arith.constant dense<0.000000e+00> : vector<8x512xf32>
    %9 = tpu.matmul %7, %8, %cst_7 {dimension_numbers = #tpu.dot_dimension_numbers<[1], [0], [0], [1], [0, 0, 1, 1], [], []>} : vector<8x256xbf16>, vector<256x512xbf16>, vector<8x512xf32> -> vector<8x512xf32>
    %c0_8 = arith.constant 0 : index
    %c0_9 = arith.constant 0 : index
    %10 = vector.load %arg5[%c0_8, %c0_9] : memref<1x512xf32, #tpu.memory_space<vmem>>, vector<1x512xf32>
    %11 = vector.broadcast %10 : vector<1x512xf32> to vector<8x512xf32>
    %12 = arith.addf %9, %11 : vector<8x512xf32>
    %13 = math.tanh %12 : vector<8x512xf32>
    %14 = arith.truncf %13 : vector<8x512xf32> to vector<8x512xbf16>
    %c0_10 = arith.constant 0 : index
    %c0_11 = arith.constant 0 : index
    %15 = vector.load %arg6[%c0_10, %c0_11] : memref<512x512xbf16, #tpu.memory_space<vmem>>, vector<512x512xbf16>
    %cst_12 = arith.constant dense<0.000000e+00> : vector<8x512xf32>
    %16 = tpu.matmul %14, %15, %cst_12 {dimension_numbers = #tpu.dot_dimension_numbers<[1], [0], [0], [1], [0, 0, 1, 1], [], []>} : vector<8x512xbf16>, vector<512x512xbf16>, vector<8x512xf32> -> vector<8x512xf32>
    %c0_13 = arith.constant 0 : index
    %c0_14 = arith.constant 0 : index
    %17 = vector.load %arg7[%c0_13, %c0_14] : memref<1x512xf32, #tpu.memory_space<vmem>>, vector<1x512xf32>
    %18 = vector.broadcast %17 : vector<1x512xf32> to vector<8x512xf32>
    %19 = arith.addf %16, %18 : vector<8x512xf32>
    %20 = math.tanh %19 : vector<8x512xf32>
    %21 = arith.truncf %20 : vector<8x512xf32> to vector<8x512xbf16>
    %c0_15 = arith.constant 0 : index
    %c0_16 = arith.constant 0 : index
    %22 = vector.load %arg8[%c0_15, %c0_16] : memref<512x512xbf16, #tpu.memory_space<vmem>>, vector<512x512xbf16>
    %cst_17 = arith.constant dense<0.000000e+00> : vector<8x512xf32>
    %23 = tpu.matmul %21, %22, %cst_17 {dimension_numbers = #tpu.dot_dimension_numbers<[1], [0], [0], [1], [0, 0, 1, 1], [], []>} : vector<8x512xbf16>, vector<512x512xbf16>, vector<8x512xf32> -> vector<8x512xf32>
    %c0_18 = arith.constant 0 : index
    %c0_19 = arith.constant 0 : index
    %24 = vector.load %arg9[%c0_18, %c0_19] : memref<1x512xf32, #tpu.memory_space<vmem>>, vector<1x512xf32>
    %25 = vector.broadcast %24 : vector<1x512xf32> to vector<8x512xf32>
    %26 = arith.addf %23, %25 : vector<8x512xf32>
    %27 = math.tanh %26 : vector<8x512xf32>
    %28 = arith.truncf %27 : vector<8x512xf32> to vector<8x512xbf16>
    %c0_20 = arith.constant 0 : index
    %c0_21 = arith.constant 0 : index
    %29 = vector.load %arg10[%c0_20, %c0_21] : memref<512x256xbf16, #tpu.memory_space<vmem>>, vector<512x256xbf16>
    %cst_22 = arith.constant dense<0.000000e+00> : vector<8x256xf32>
    %30 = tpu.matmul %28, %29, %cst_22 {dimension_numbers = #tpu.dot_dimension_numbers<[1], [0], [0], [1], [0, 0, 1, 1], [], []>} : vector<8x512xbf16>, vector<512x256xbf16>, vector<8x256xf32> -> vector<8x256xf32>
    %c0_23 = arith.constant 0 : index
    %c0_24 = arith.constant 0 : index
    %31 = vector.load %arg11[%c0_23, %c0_24] : memref<1x256xf32, #tpu.memory_space<vmem>>, vector<1x256xf32>
    %32 = vector.broadcast %31 : vector<1x256xf32> to vector<8x256xf32>
    %33 = arith.addf %30, %32 : vector<8x256xf32>
    %34 = math.tanh %33 : vector<8x256xf32>
    %35 = arith.truncf %34 : vector<8x256xf32> to vector<8x256xbf16>
    %c0_25 = arith.constant 0 : index
    %c0_26 = arith.constant 0 : index
    %36 = vector.load %arg12[%c0_25, %c0_26] : memref<256x128xbf16, #tpu.memory_space<vmem>>, vector<256x128xbf16>
    %cst_27 = arith.constant dense<0.000000e+00> : vector<8x128xf32>
    %37 = tpu.matmul %35, %36, %cst_27 {dimension_numbers = #tpu.dot_dimension_numbers<[1], [0], [0], [1], [0, 0, 1, 1], [], []>} : vector<8x256xbf16>, vector<256x128xbf16>, vector<8x128xf32> -> vector<8x128xf32>
    %c0_28 = arith.constant 0 : index
    %c0_29 = arith.constant 0 : index
    %38 = vector.load %arg13[%c0_28, %c0_29] : memref<1x128xf32, #tpu.memory_space<vmem>>, vector<1x128xf32>
    %39 = vector.broadcast %38 : vector<1x128xf32> to vector<8x128xf32>
    %40 = arith.addf %37, %39 : vector<8x128xf32>
    %41 = tpu.iota {dimensions = array<i32: 1>} : vector<8x128xi32>
    %c16_i32 = arith.constant 16 : i32
    %42 = vector.broadcast %c16_i32 : i32 to vector<8x128xi32>
    %43 = arith.cmpi slt, %41, %42 : vector<8x128xi32>
    %cst_30 = arith.constant -1.000000e+30 : f32
    %44 = vector.broadcast %cst_30 : f32 to vector<8x128xf32>
    %45 = arith.select %43, %40, %44 : vector<8x128xi1>, vector<8x128xf32>
    %cst_31 = arith.constant dense<0xFF800000> : vector<8xf32>
    %46 = vector.multi_reduction <maximumf>, %45, %cst_31 [1] : vector<8x128xf32> to vector<8xf32>
    %47 = vector.shape_cast %46 : vector<8xf32> to vector<8x1xf32>
    %48 = vector.broadcast %47 : vector<8x1xf32> to vector<8x128xf32>
    %49 = arith.subf %45, %48 : vector<8x128xf32>
    %50 = math.exp %49 : vector<8x128xf32>
    %cst_32 = arith.constant 0.000000e+00 : f32
    %51 = vector.broadcast %cst_32 : f32 to vector<8x128xf32>
    %52 = arith.select %43, %50, %51 : vector<8x128xi1>, vector<8x128xf32>
    %cst_33 = arith.constant dense<0.000000e+00> : vector<8xf32>
    %53 = vector.multi_reduction <add>, %52, %cst_33 [1] : vector<8x128xf32> to vector<8xf32>
    %54 = vector.shape_cast %53 : vector<8xf32> to vector<8x1xf32>
    %55 = vector.broadcast %54 : vector<8x1xf32> to vector<8x128xf32>
    %56 = arith.divf %52, %55 : vector<8x128xf32>
    %c16_i32_34 = arith.constant 16 : i32
    %57 = vector.broadcast %c16_i32_34 : i32 to vector<8x128xi32>
    %58 = arith.cmpi eq, %41, %57 : vector<8x128xi32>
    %cst_35 = arith.constant 0.000000e+00 : f32
    %59 = vector.broadcast %cst_35 : f32 to vector<8x128xf32>
    %60 = arith.select %58, %40, %59 : vector<8x128xi1>, vector<8x128xf32>
    %61 = arith.addf %56, %60 : vector<8x128xf32>
    %c0_36 = arith.constant 0 : index
    %c0_37 = arith.constant 0 : index
    %62 = vector.load %arg14[%c0_36, %c0_37] : memref<8x128xf32, #tpu.memory_space<vmem>>, vector<8x128xf32>
    tpu.vector_store %arg14[%c0_36, %c0_37], %61 {strides = array<i32>} : memref<8x128xf32, #tpu.memory_space<vmem>>, vector<8x128xf32>,
    return
  }
  func.func @transform_0(%arg0: i32) -> (i32, i32) {
    %c0_i32 = arith.constant 0 : i32
    %c0_i32_0 = arith.constant 0 : i32
    return %arg0, %c0_i32 : i32, i32
  }
  func.func @transform_1(%arg0: i32) -> (i32, i32) {
    %c0_i32 = arith.constant 0 : i32
    %c0_i32_0 = arith.constant 0 : i32
    %c0_i32_1 = arith.constant 0 : i32
    return %c0_i32, %c0_i32_0 : i32, i32
  }
  func.func @transform_2(%arg0: i32) -> (i32, i32) {
    %c0_i32 = arith.constant 0 : i32
    %c0_i32_0 = arith.constant 0 : i32
    %c0_i32_1 = arith.constant 0 : i32
    return %c0_i32, %c0_i32_0 : i32, i32
  }
  func.func @transform_3(%arg0: i32) -> (i32, i32) {
    %c0_i32 = arith.constant 0 : i32
    %c0_i32_0 = arith.constant 0 : i32
    %c0_i32_1 = arith.constant 0 : i32
    return %c0_i32, %c0_i32_0 : i32, i32
  }
  func.func @transform_4(%arg0: i32) -> (i32, i32) {
    %c0_i32 = arith.constant 0 : i32
    %c0_i32_0 = arith.constant 0 : i32
    %c0_i32_1 = arith.constant 0 : i32
    return %c0_i32, %c0_i32_0 : i32, i32
  }
  func.func @transform_5(%arg0: i32) -> (i32, i32) {
    %c0_i32 = arith.constant 0 : i32
    %c0_i32_0 = arith.constant 0 : i32
    %c0_i32_1 = arith.constant 0 : i32
    return %c0_i32, %c0_i32_0 : i32, i32
  }
  func.func @transform_6(%arg0: i32) -> (i32, i32) {
    %c0_i32 = arith.constant 0 : i32
    %c0_i32_0 = arith.constant 0 : i32
    %c0_i32_1 = arith.constant 0 : i32
    return %c0_i32, %c0_i32_0 : i32, i32
  }
  func.func @transform_7(%arg0: i32) -> (i32, i32) {
    %c0_i32 = arith.constant 0 : i32
    %c0_i32_0 = arith.constant 0 : i32
    %c0_i32_1 = arith.constant 0 : i32
    return %c0_i32, %c0_i32_0 : i32, i32
  }
  func.func @transform_8(%arg0: i32) -> (i32, i32) {
    %c0_i32 = arith.constant 0 : i32
    %c0_i32_0 = arith.constant 0 : i32
    %c0_i32_1 = arith.constant 0 : i32
    return %c0_i32, %c0_i32_0 : i32, i32
  }
  func.func @transform_9(%arg0: i32) -> (i32, i32) {
    %c0_i32 = arith.constant 0 : i32
    %c0_i32_0 = arith.constant 0 : i32
    %c0_i32_1 = arith.constant 0 : i32
    return %c0_i32, %c0_i32_0 : i32, i32
  }
  func.func @transform_10(%arg0: i32) -> (i32, i32) {
    %c0_i32 = arith.constant 0 : i32
    %c0_i32_0 = arith.constant 0 : i32
    %c0_i32_1 = arith.constant 0 : i32
    return %c0_i32, %c0_i32_0 : i32, i32
  }
  func.func @transform_11(%arg0: i32) -> (i32, i32) {
    %c0_i32 = arith.constant 0 : i32
    %c0_i32_0 = arith.constant 0 : i32
    %c0_i32_1 = arith.constant 0 : i32
    return %c0_i32, %c0_i32_0 : i32, i32
  }
  func.func @transform_12(%arg0: i32) -> (i32, i32) {
    %c0_i32 = arith.constant 0 : i32
    %c0_i32_0 = arith.constant 0 : i32
    %c0_i32_1 = arith.constant 0 : i32
    return %c0_i32, %c0_i32_0 : i32, i32
  }
  func.func @transform_13(%arg0: i32) -> (i32, i32) {
    %c0_i32 = arith.constant 0 : i32
    %c0_i32_0 = arith.constant 0 : i32
    return %arg0, %c0_i32 : i32, i32
  }
}

</mosaic_0001>

<llo_original>
// kernel: tpu_custom_call.1
$region0: #{tpu_custom_call.1}
  #allocation0 [shape = 'u32[]', space=smem, size = 0x4, offset = 0x4, fixed_abs, tag = 'smem constant byte address 0x4 - core index']
  #allocation1 [shape = 'u32[144,128]{1,0:T(1,128)}', space=vmem, size = 0x12000, scoped, tag = 'internal scratch']
  %s0 = inlined_call_operand.hbm [shape: bf16[8,128], index: 0, kind: input, shape index: {}]
  %s1 = inlined_call_operand.hbm [shape: bf16[128,256], index: 1, kind: input, shape index: {}]
  %s2 = inlined_call_operand.vmem [shape: f32[1,256], index: 2, kind: input, shape index: {}]
  %s3 = inlined_call_operand.hbm [shape: bf16[256,512], index: 3, kind: input, shape index: {}]
  %s4 = inlined_call_operand.vmem [shape: f32[1,512], index: 4, kind: input, shape index: {}]
  %s5 = inlined_call_operand.hbm [shape: bf16[512,512], index: 5, kind: input, shape index: {}]
  %s6 = inlined_call_operand.vmem [shape: f32[1,512], index: 6, kind: input, shape index: {}]
  %s7 = inlined_call_operand.hbm [shape: bf16[512,512], index: 7, kind: input, shape index: {}]
  %s8 = inlined_call_operand.vmem [shape: f32[1,512], index: 8, kind: input, shape index: {}]
  %s9 = inlined_call_operand.hbm [shape: bf16[512,256], index: 9, kind: input, shape index: {}]
  %s10 = inlined_call_operand.vmem [shape: f32[1,256], index: 10, kind: input, shape index: {}]
  %s11 = inlined_call_operand.hbm [shape: bf16[256,128], index: 11, kind: input, shape index: {}]
  %s12 = inlined_call_operand.vmem [shape: f32[1,128], index: 12, kind: input, shape index: {}]
  %s13 = inlined_call_operand.hbm [shape: f32[8,128], index: 13, kind: output, shape index: {}]
  %s14 = sld [smem:[#allocation0]]
  $region90: #{tpu_custom_call.1} parent=0
    _
  %s16 = ssub.s32 1, %s14
  %s17 = scalar_select 0, %s16, %s14
  $region1: #{tpu_custom_call.1} parent=0
    #allocation2 [shape = 'u8[2048]{0}', space=vmem, size = 0x800, scoped, tag = 'input window, operand 0, single buffered']
    #allocation3 [shape = 's32[1]{0}', space=sflag, size = 0x4, scoped, tag = 'scoped memory for tpu_custom_call.1']
    #allocation4 [shape = 's32[1]{0}', space=sflag, size = 0x4, scoped, tag = 'scoped memory for tpu_custom_call.1']
    #allocation5 [shape = 'u8[65536]{0}', space=vmem, size = 0x10000, scoped, tag = 'input window, operand 1, single buffered']
    #allocation6 [shape = 's32[1]{0}', space=sflag, size = 0x4, scoped, tag = 'scoped memory for tpu_custom_call.1']
    #allocation7 [shape = 'u8[262144]{0}', space=vmem, size = 0x40000, scoped, tag = 'input window, operand 3, single buffered']
    #allocation8 [shape = 'u8[524288]{0}', space=vmem, size = 0x80000, scoped, tag = 'input window, operand 5, single buffered']
    #allocation9 [shape = 's32[1]{0}', space=sflag, size = 0x4, scoped, tag = 'scoped memory for tpu_custom_call.1']
    #allocation10 [shape = 'u8[524288]{0}', space=vmem, size = 0x80000, scoped, tag = 'input window, operand 7, single buffered']
    #allocation11 [shape = 'u8[262144]{0}', space=vmem, size = 0x40000, scoped, tag = 'input window, operand 9, single buffered']
    #allocation12 [shape = 's32[1]{0}', space=sflag, size = 0x4, scoped, tag = 'scoped memory for tpu_custom_call.1']
    #allocation13 [shape = 'u8[65536]{0}', space=vmem, size = 0x10000, scoped, tag = 'input window, operand 11, single buffered']
    #allocation14 [shape = 'u8[4096]{0}', space=vmem, size = 0x1000, scoped, tag = 'output window, operand 0, single buffered']
    %18 = vsyncpa [#allocation3], 0
    %19 = vsyncpa [#allocation6], 0
    %20 = vsyncpa [#allocation9], 0
    %21 = vsyncpa [#allocation12], 0
    %22 = vsyncpa [#allocation4], 0
    // Predicated region
    $region2: #{tpu_custom_call.1} parent=1 // pred_check
      _
    $region3: #{tpu_custom_call.1} parent=1 // pred_check_branch
      %24 = sbr.rel (0) target = $region5
    $region4: #{tpu_custom_call.1} parent=1 // pred_region
      %s26 = ssub.s32 64, 64
      %27 = vsyncadd [#allocation3], %s26
      %s29 = sshll.u32 [#allocation2], 4
      %s30 = int_to_ptr.vmem [resolvable:$true] %s29
      %32 = dma.hbm_to_vmem [thread:$0]  %s0, 64, %s30, [#allocation3]
    $region5: #{tpu_custom_call.1} parent=1 // pred_fallthru
      _
    // Predicated region
    $region6: #{tpu_custom_call.1} parent=1 // pred_check
      _
    $region7: #{tpu_custom_call.1} parent=1 // pred_check_branch
      %34 = sbr.rel (0) target = $region9
    $region8: #{tpu_custom_call.1} parent=1 // pred_region
      %s36 = ssub.s32 2048, 2048
      %37 = vsyncadd [#allocation6], %s36
      %s38 = sshll.u32 [#allocation5], 4
      %s39 = int_to_ptr.vmem [resolvable:$true] %s38
      %44 = dma.hbm_to_vmem [thread:$0]  %s1, 2048, %s39, [#allocation6], 128, 128, 8
    $region9: #{tpu_custom_call.1} parent=1 // pred_fallthru
      _
    // Predicated region
    $region10: #{tpu_custom_call.1} parent=1 // pred_check
      _
    $region11: #{tpu_custom_call.1} parent=1 // pred_check_branch
      %46 = sbr.rel (0) target = $region13
    $region12: #{tpu_custom_call.1} parent=1 // pred_region
      _
    $region13: #{tpu_custom_call.1} parent=1 // pred_fallthru
      _
    // Predicated region
    $region14: #{tpu_custom_call.1} parent=1 // pred_check
      _
    $region15: #{tpu_custom_call.1} parent=1 // pred_check_branch
      %48 = sbr.rel (0) target = $region17
    $region16: #{tpu_custom_call.1} parent=1 // pred_region
      %s50 = ssub.s32 8192, 8192
      %51 = vsyncadd [#allocation6], %s50
      %s52 = sshll.u32 [#allocation7], 4
      %s53 = int_to_ptr.vmem [resolvable:$true] %s52
      %58 = dma.hbm_to_vmem [thread:$0]  %s3, 8192, %s53, [#allocation6], 256, 256, 16
    $region17: #{tpu_custom_call.1} parent=1 // pred_fallthru
      _
    // Predicated region
    $region18: #{tpu_custom_call.1} parent=1 // pred_check
      _
    $region19: #{tpu_custom_call.1} parent=1 // pred_check_branch
      %60 = sbr.rel (0) target = $region21
    $region20: #{tpu_custom_call.1} parent=1 // pred_region
      _
    $region21: #{tpu_custom_call.1} parent=1 // pred_fallthru
      _
    // Predicated region
    $region22: #{tpu_custom_call.1} parent=1 // pred_check
      _
    $region23: #{tpu_custom_call.1} parent=1 // pred_check_branch
      %62 = sbr.rel (0) target = $region25
    $region24: #{tpu_custom_call.1} parent=1 // pred_region
      %s64 = ssub.s32 16384, 16384
      %65 = vsyncadd [#allocation9], %s64
      %s66 = sshll.u32 [#allocation8], 4
      %s67 = int_to_ptr.vmem [resolvable:$true] %s66
      %72 = dma.hbm_to_vmem [thread:$0]  %s5, 16384, %s67, [#allocation9], 256, 256, 16
    $region25: #{tpu_custom_call.1} parent=1 // pred_fallthru
      _
    // Predicated region
    $region26: #{tpu_custom_call.1} parent=1 // pred_check
      _
    $region27: #{tpu_custom_call.1} parent=1 // pred_check_branch
      %74 = sbr.rel (0) target = $region29
    $region28: #{tpu_custom_call.1} parent=1 // pred_region
      _
    $region29: #{tpu_custom_call.1} parent=1 // pred_fallthru
      _
    // Predicated region
    $region30: #{tpu_custom_call.1} parent=1 // pred_check
      _
    $region31: #{tpu_custom_call.1} parent=1 // pred_check_branch
      %76 = sbr.rel (0) target = $region33
    $region32: #{tpu_custom_call.1} parent=1 // pred_region
      %s78 = ssub.s32 16384, 16384
      %79 = vsyncadd [#allocation9], %s78
      %s80 = sshll.u32 [#allocation10], 4
      %s81 = int_to_ptr.vmem [resolvable:$true] %s80
      %86 = dma.hbm_to_vmem [thread:$0]  %s7, 16384, %s81, [#allocation9], 256, 256, 16
    $region33: #{tpu_custom_call.1} parent=1 // pred_fallthru
      _
    // Predicated region
    $region34: #{tpu_custom_call.1} parent=1 // pred_check
      _
    $region35: #{tpu_custom_call.1} parent=1 // pred_check_branch
      %88 = sbr.rel (0) target = $region37
    $region36: #{tpu_custom_call.1} parent=1 // pred_region
      _
    $region37: #{tpu_custom_call.1} parent=1 // pred_fallthru
      _
    // Predicated region
    $region38: #{tpu_custom_call.1} parent=1 // pred_check
      _
    $region39: #{tpu_custom_call.1} parent=1 // pred_check_branch
      %90 = sbr.rel (0) target = $region41
    $region40: #{tpu_custom_call.1} parent=1 // pred_region
      %s92 = ssub.s32 8192, 8192
      %93 = vsyncadd [#allocation12], %s92
      %s94 = sshll.u32 [#allocation11], 4
      %s95 = int_to_ptr.vmem [resolvable:$true] %s94
      %100 = dma.hbm_to_vmem [thread:$0]  %s9, 8192, %s95, [#allocation12], 128, 128, 8
    $region41: #{tpu_custom_call.1} parent=1 // pred_fallthru
      _
    // Predicated region
    $region42: #{tpu_custom_call.1} parent=1 // pred_check
      _
    $region43: #{tpu_custom_call.1} parent=1 // pred_check_branch
      %102 = sbr.rel (0) target = $region45
    $region44: #{tpu_custom_call.1} parent=1 // pred_region
      _
    $region45: #{tpu_custom_call.1} parent=1 // pred_fallthru
      _
    // Predicated region
    $region46: #{tpu_custom_call.1} parent=1 // pred_check
      _
    $region47: #{tpu_custom_call.1} parent=1 // pred_check_branch
      %104 = sbr.rel (0) target = $region49
    $region48: #{tpu_custom_call.1} parent=1 // pred_region
      %s106 = ssub.s32 2048, 2048
      %107 = vsyncadd [#allocation12], %s106
      %s108 = sshll.u32 [#allocation13], 4
      %s109 = int_to_ptr.vmem [resolvable:$true] %s108
      %114 = dma.hbm_to_vmem [thread:$0]  %s11, 2048, %s109, [#allocation12], 64, 64, 4
    $region49: #{tpu_custom_call.1} parent=1 // pred_fallthru
      _
    // Predicated region
    $region50: #{tpu_custom_call.1} parent=1 // pred_check
      _
    $region51: #{tpu_custom_call.1} parent=1 // pred_check_branch
      %116 = sbr.rel (0) target = $region53
    $region52: #{tpu_custom_call.1} parent=1 // pred_region
      _
    $region53: #{tpu_custom_call.1} parent=1 // pred_fallthru
      _
    // Predicated region
    $region54: #{tpu_custom_call.1} parent=1 // pred_check
      _
    $region55: #{tpu_custom_call.1} parent=1 // pred_check_branch
      %118 = sbr.rel (0) target = $region57
    $region56: #{tpu_custom_call.1} parent=1 // pred_region
      %119 = dma.done [#allocation3], 64
    $region57: #{tpu_custom_call.1} parent=1 // pred_fallthru
      _
    // Predicated region
    $region58: #{tpu_custom_call.1} parent=1 // pred_check
      _
    $region59: #{tpu_custom_call.1} parent=1 // pred_check_branch
      %121 = sbr.rel (0) target = $region61
    $region60: #{tpu_custom_call.1} parent=1 // pred_region
      %122 = dma.done [#allocation6], 2048
    $region61: #{tpu_custom_call.1} parent=1 // pred_fallthru
      _
    // Predicated region
    $region62: #{tpu_custom_call.1} parent=1 // pred_check
      _
    $region63: #{tpu_custom_call.1} parent=1 // pred_check_branch
      %124 = sbr.rel (0) target = $region65
    $region64: #{tpu_custom_call.1} parent=1 // pred_region
      %125 = dma.done [#allocation6], 8192
    $region65: #{tpu_custom_call.1} parent=1 // pred_fallthru
      _
    // Predicated region
    $region66: #{tpu_custom_call.1} parent=1 // pred_check
      _
    $region67: #{tpu_custom_call.1} parent=1 // pred_check_branch
      %127 = sbr.rel (0) target = $region69
    $region68: #{tpu_custom_call.1} parent=1 // pred_region
      %128 = dma.done [#allocation9], 16384
    $region69: #{tpu_custom_call.1} parent=1 // pred_fallthru
      _
    // Predicated region
    $region70: #{tpu_custom_call.1} parent=1 // pred_check
      _
    $region71: #{tpu_custom_call.1} parent=1 // pred_check_branch
      %130 = sbr.rel (0) target = $region73
    $region72: #{tpu_custom_call.1} parent=1 // pred_region
      %131 = dma.done [#allocation9], 16384
    $region73: #{tpu_custom_call.1} parent=1 // pred_fallthru
      _
    // Predicated region
    $region74: #{tpu_custom_call.1} parent=1 // pred_check
      _
    $region75: #{tpu_custom_call.1} parent=1 // pred_check_branch
      %133 = sbr.rel (0) target = $region77
    $region76: #{tpu_custom_call.1} parent=1 // pred_region
      %134 = dma.done [#allocation12], 8192
    $region77: #{tpu_custom_call.1} parent=1 // pred_fallthru
      _
    // Predicated region
    $region78: #{tpu_custom_call.1} parent=1 // pred_check
      _
    $region79: #{tpu_custom_call.1} parent=1 // pred_check_branch
      %136 = sbr.rel (0) target = $region81
    $region80: #{tpu_custom_call.1} parent=1 // pred_region
      %137 = dma.done [#allocation12], 2048
    $region81: #{tpu_custom_call.1} parent=1 // pred_fallthru
      _
    %v139 = vld [vmem:[#allocation2] sm:$0xf]
    %v140 = vld [vmem:[#allocation5] sm:$0xff]
    %v141 = vld [vmem:[#allocation5 + $0x8] sm:$0xff]
    %v142 = vld [vmem:[#allocation5 + $0x10] sm:$0xff]
    %v143 = vld [vmem:[#allocation5 + $0x18] sm:$0xff]
    %v144 = vld [vmem:[#allocation5 + $0x20] sm:$0xff]
    %v145 = vld [vmem:[#allocation5 + $0x28] sm:$0xff]
    %v146 = vld [vmem:[#allocation5 + $0x30] sm:$0xff]
    %v147 = vld [vmem:[#allocation5 + $0x38] sm:$0xff]
    %v148 = vld [vmem:[#allocation5 + $0x40] sm:$0xff]
    %v149 = vld [vmem:[#allocation5 + $0x48] sm:$0xff]
    %v150 = vld [vmem:[#allocation5 + $0x50] sm:$0xff]
    %v151 = vld [vmem:[#allocation5 + $0x58] sm:$0xff]
    %v152 = vld [vmem:[#allocation5 + $0x60] sm:$0xff]
    %v153 = vld [vmem:[#allocation5 + $0x68] sm:$0xff]
    %v154 = vld [vmem:[#allocation5 + $0x70] sm:$0xff]
    %v155 = vld [vmem:[#allocation5 + $0x78] sm:$0xff]
    %v156 = vld [vmem:[%s2] sm:$0x3]
    %v158 = vlaneseq
    %v159 = vshrl.u32 %v158, 7
    %v160 = vsub.s32 0, %v159
    %v161 = vrot.slane %v156, %v160
    %v162 = vlaneseq
    %v163 = vshrl.u32 %v162, 7
    %v164 = vsub.s32 1, %v163
    %v165 = vrot.slane %v156, %v164
    %v184 = vunpack.c.l.b16 %v140
    %v185 = vunpack.c.h.b16 %v140
    %v186 = vunpack.c.l.b16 %v141
    %v187 = vunpack.c.h.b16 %v141
    %v188 = vunpack.c.l.b16 %v142
    %v189 = vunpack.c.h.b16 %v142
    %v190 = vunpack.c.l.b16 %v143
    %v191 = vunpack.c.h.b16 %v143
    %v192 = vunpack.c.l.b16 %v144
    %v193 = vunpack.c.h.b16 %v144
    %v194 = vunpack.c.l.b16 %v145
    %v195 = vunpack.c.h.b16 %v145
    %v196 = vunpack.c.l.b16 %v146
    %v197 = vunpack.c.h.b16 %v146
    %v198 = vunpack.c.l.b16 %v147
    %v199 = vunpack.c.h.b16 %v147
    %v200 = vunpack.c.l.b16 %v148
    %v201 = vunpack.c.h.b16 %v148
    %v202 = vunpack.c.l.b16 %v149
    %v203 = vunpack.c.h.b16 %v149
    %v204 = vunpack.c.l.b16 %v150
    %v205 = vunpack.c.h.b16 %v150
    %v206 = vunpack.c.l.b16 %v151
    %v207 = vunpack.c.h.b16 %v151
    %v208 = vunpack.c.l.b16 %v152
    %v209 = vunpack.c.h.b16 %v152
    %v210 = vunpack.c.l.b16 %v153
    %v211 = vunpack.c.h.b16 %v153
    %v212 = vunpack.c.l.b16 %v154
    %v213 = vunpack.c.h.b16 %v154
    %v214 = vunpack.c.l.b16 %v155
    %v215 = vunpack.c.h.b16 %v155
    %v216 = vpack.c.b16 %v186, %v184
    %v217 = vpack.c.b16 %v187, %v185
    %v218 = vpack.c.b16 %v190, %v188
    %v219 = vpack.c.b16 %v191, %v189
    %v220 = vpack.c.b16 %v194, %v192
    %v221 = vpack.c.b16 %v195, %v193
    %v222 = vpack.c.b16 %v198, %v196
    %v223 = vpack.c.b16 %v199, %v197
    %v224 = vpack.c.b16 %v202, %v200
    %v225 = vpack.c.b16 %v203, %v201
    %v226 = vpack.c.b16 %v206, %v204
    %v227 = vpack.c.b16 %v207, %v205
    %v228 = vpack.c.b16 %v210, %v208
    %v229 = vpack.c.b16 %v211, %v209
    %v230 = vpack.c.b16 %v214, %v212
    %v231 = vpack.c.b16 %v215, %v213
    %248 = vmatprep.subr.bf16.mxu0 %v217
    %249 = vmatpush1.bf16.msra.mxu0 %v216
    %250 = vmatprep.subr.bf16.mxu0 %v219
    %251 = vmatpush1.bf16.msra.mxu0 %v218
    %252 = vmatprep.subr.bf16.mxu0 %v221
    %253 = vmatpush1.bf16.msra.mxu0 %v220
    %254 = vmatprep.subr.bf16.mxu0 %v223
    %255 = vmatpush1.bf16.msra.mxu0 %v222
    %256 = vmatprep.subr.bf16.mxu0 %v225
    %257 = vmatpush1.bf16.msra.mxu0 %v224
    %258 = vmatprep.subr.bf16.mxu0 %v227
    %259 = vmatpush1.bf16.msra.mxu0 %v226
    %260 = vmatprep.subr.bf16.mxu0 %v229
    %261 = vmatpush1.bf16.msra.mxu0 %v228
    %262 = vmatprep.subr.bf16.mxu0 %v231
    %263 = vmatpush1.bf16.msra.mxu0 %v230
    %264 = vmatprep.subr.bf16.mxu0 0
    %265 = vmatpush1.bf16.msra.mxu0 0
    %266 = vmatprep.subr.bf16.mxu0 0
    %267 = vmatpush1.bf16.msra.mxu0 0
    %268 = vmatprep.subr.bf16.mxu0 0
    %269 = vmatpush1.bf16.msra.mxu0 0
    %270 = vmatprep.subr.bf16.mxu0 0
    %271 = vmatpush1.bf16.msra.mxu0 0
    %272 = vmatprep.subr.bf16.mxu0 0
    %273 = vmatpush1.bf16.msra.mxu0 0
    %274 = vmatprep.subr.bf16.mxu0 0
    %275 = vmatpush1.bf16.msra.mxu0 0
    %276 = vmatprep.subr.bf16.mxu0 0
    %277 = vmatpush1.bf16.msra.mxu0 0
    %278 = vmatprep.subr.bf16.mxu0 0
    %279 = vmatpush1.bf16.msra.mxu0 0
    %280 = vmatprep.mubr.bf16.mxu0 0
    %281 = vmatmul.mubr.bf16.gmra.mrb[0].mxu0 %v139
    %v282 = vpop.f32.mrb[0].mxu0
    %v283 = vadd.f32 %v161, %v282
    %v284 = vpop.f32.mrb[0].mxu0
    %v285 = vadd.f32 %v165, %v284
    %v286 = vpop.f32.mrb[0].mxu0
    %v287 = vpop.f32.mrb[0].mxu0
    %288 = vdwg.mxu0
    %v289 = vtanh.pop %v283
    %v290 = vtanh.pop %v285
    %v291 = vpack.c.bf16 %v289, %v289
    %v292 = vpack.c.bf16 %v290, %v290
    %v293 = vld [vmem:[#allocation7] sm:$0xff]
    %v294 = vld [vmem:[#allocation7 + $0x8] sm:$0xff]
    %v295 = vld [vmem:[#allocation7 + $0x10] sm:$0xff]
    %v296 = vld [vmem:[#allocation7 + $0x18] sm:$0xff]
    %v297 = vld [vmem:[#allocation7 + $0x20] sm:$0xff]
    %v298 = vld [vmem:[#allocation7 + $0x28] sm:$0xff]
    %v299 = vld [vmem:[#allocation7 + $0x30] sm:$0xff]
    %v300 = vld [vmem:[#allocation7 + $0x38] sm:$0xff]
    %v301 = vld [vmem:[#allocation7 + $0x40] sm:$0xff]
    %v302 = vld [vmem:[#allocation7 + $0x48] sm:$0xff]
    %v303 = vld [vmem:[#allocation7 + $0x50] sm:$0xff]
    %v304 = vld [vmem:[#allocation7 + $0x58] sm:$0xff]
    %v305 = vld [vmem:[#allocation7 + $0x60] sm:$0xff]
    %v306 = vld [vmem:[#allocation7 + $0x68] sm:$0xff]
    %v307 = vld [vmem:[#allocation7 + $0x70] sm:$0xff]
    %v308 = vld [vmem:[#allocation7 + $0x78] sm:$0xff]
    %v309 = vld [vmem:[#allocation7 + $0x80] sm:$0xff]
    %v310 = vld [vmem:[#allocation7 + $0x88] sm:$0xff]
    %v311 = vld [vmem:[#allocation7 + $0x90] sm:$0xff]
    %v312 = vld [vmem:[#allocation7 + $0x98] sm:$0xff]
    %v313 = vld [vmem:[#allocation7 + $0xa0] sm:$0xff]
    %v314 = vld [vmem:[#allocation7 + $0xa8] sm:$0xff]
    %v315 = vld [vmem:[#allocation7 + $0xb0] sm:$0xff]
    %v316 = vld [vmem:[#allocation7 + $0xb8] sm:$0xff]
    %v317 = vld [vmem:[#allocation7 + $0xc0] sm:$0xff]
    %v318 = vld [vmem:[#allocation7 + $0xc8] sm:$0xff]
    %v319 = vld [vmem:[#allocation7 + $0xd0] sm:$0xff]
    %v320 = vld [vmem:[#allocation7 + $0xd8] sm:$0xff]
    %v321 = vld [vmem:[#allocation7 + $0xe0] sm:$0xff]
    %v322 = vld [vmem:[#allocation7 + $0xe8] sm:$0xff]
    %v323 = vld [vmem:[#allocation7 + $0xf0] sm:$0xff]
    %v324 = vld [vmem:[#allocation7 + $0xf8] sm:$0xff]
    %v325 = vld [vmem:[#allocation7 + $0x100] sm:$0xff]
    %v326 = vld [vmem:[#allocation7 + $0x108] sm:$0xff]
    %v327 = vld [vmem:[#allocation7 + $0x110] sm:$0xff]
    %v328 = vld [vmem:[#allocation7 + $0x118] sm:$0xff]
    %v329 = vld [vmem:[#allocation7 + $0x120] sm:$0xff]
    %v330 = vld [vmem:[#allocation7 + $0x128] sm:$0xff]
    %v331 = vld [vmem:[#allocation7 + $0x130] sm:$0xff]
    %v332 = vld [vmem:[#allocation7 + $0x138] sm:$0xff]
    %v333 = vld [vmem:[#allocation7 + $0x140] sm:$0xff]
    %v334 = vld [vmem:[#allocation7 + $0x148] sm:$0xff]
    %v335 = vld [vmem:[#allocation7 + $0x150] sm:$0xff]
    %v336 = vld [vmem:[#allocation7 + $0x158] sm:$0xff]
    %v337 = vld [vmem:[#allocation7 + $0x160] sm:$0xff]
    %v338 = vld [vmem:[#allocation7 + $0x168] sm:$0xff]
    %v339 = vld [vmem:[#allocation7 + $0x170] sm:$0xff]
    %v340 = vld [vmem:[#allocation7 + $0x178] sm:$0xff]
    %v341 = vld [vmem:[#allocation7 + $0x180] sm:$0xff]
    %v342 = vld [vmem:[#allocation7 + $0x188] sm:$0xff]
    %v343 = vld [vmem:[#allocation7 + $0x190] sm:$0xff]
    %v344 = vld [vmem:[#allocation7 + $0x198] sm:$0xff]
    %v345 = vld [vmem:[#allocation7 + $0x1a0] sm:$0xff]
    %v346 = vld [vmem:[#allocation7 + $0x1a8] sm:$0xff]
    %v347 = vld [vmem:[#allocation7 + $0x1b0] sm:$0xff]
    %v348 = vld [vmem:[#allocation7 + $0x1b8] sm:$0xff]
    %v349 = vld [vmem:[#allocation7 + $0x1c0] sm:$0xff]
    %v350 = vld [vmem:[#allocation7 + $0x1c8] sm:$0xff]
    %v351 = vld [vmem:[#allocation7 + $0x1d0] sm:$0xff]
    %v352 = vld [vmem:[#allocation7 + $0x1d8] sm:$0xff]
    %v353 = vld [vmem:[#allocation7 + $0x1e0] sm:$0xff]
    %v354 = vld [vmem:[#allocation7 + $0x1e8] sm:$0xff]
    %v355 = vld [vmem:[#allocation7 + $0x1f0] sm:$0xff]
    %v356 = vld [vmem:[#allocation7 + $0x1f8] sm:$0xff]
    %v357 = vld [vmem:[%s4] sm:$0xf]
    %v359 = vlaneseq
    %v360 = vshrl.u32 %v359, 7
    %v361 = vsub.s32 0, %v360
    %v362 = vrot.slane %v357, %v361
    %v363 = vlaneseq
    %v364 = vshrl.u32 %v363, 7
    %v365 = vsub.s32 1, %v364
    %v366 = vrot.slane %v357, %v365
    %v367 = vlaneseq
    %v368 = vshrl.u32 %v367, 7
    %v369 = vsub.s32 2, %v368
    %v370 = vrot.slane %v357, %v369
    %v371 = vlaneseq
    %v372 = vshrl.u32 %v371, 7
    %v373 = vsub.s32 3, %v372
    %v374 = vrot.slane %v357, %v373
    %v443 = vunpack.c.l.b16 %v293
    %v444 = vunpack.c.h.b16 %v293
    %v445 = vunpack.c.l.b16 %v294
    %v446 = vunpack.c.h.b16 %v294
    %v447 = vunpack.c.l.b16 %v295
    %v448 = vunpack.c.h.b16 %v295
    %v449 = vunpack.c.l.b16 %v296
    %v450 = vunpack.c.h.b16 %v296
    %v451 = vunpack.c.l.b16 %v297
    %v452 = vunpack.c.h.b16 %v297
    %v453 = vunpack.c.l.b16 %v298
    %v454 = vunpack.c.h.b16 %v298
    %v455 = vunpack.c.l.b16 %v299
    %v456 = vunpack.c.h.b16 %v299
    %v457 = vunpack.c.l.b16 %v300
    %v458 = vunpack.c.h.b16 %v300
    %v459 = vunpack.c.l.b16 %v301
    %v460 = vunpack.c.h.b16 %v301
    %v461 = vunpack.c.l.b16 %v302
    %v462 = vunpack.c.h.b16 %v302
    %v463 = vunpack.c.l.b16 %v303
    %v464 = vunpack.c.h.b16 %v303
    %v465 = vunpack.c.l.b16 %v304
    %v466 = vunpack.c.h.b16 %v304
    %v467 = vunpack.c.l.b16 %v305
    %v468 = vunpack.c.h.b16 %v305
    %v469 = vunpack.c.l.b16 %v306
    %v470 = vunpack.c.h.b16 %v306
    %v471 = vunpack.c.l.b16 %v307
    %v472 = vunpack.c.h.b16 %v307
    %v473 = vunpack.c.l.b16 %v308
    %v474 = vunpack.c.h.b16 %v308
    %v475 = vunpack.c.l.b16 %v309
    %v476 = vunpack.c.h.b16 %v309
    %v477 = vunpack.c.l.b16 %v310
    %v478 = vunpack.c.h.b16 %v310
    %v479 = vunpack.c.l.b16 %v311
    %v480 = vunpack.c.h.b16 %v311
    %v481 = vunpack.c.l.b16 %v312
    %v482 = vunpack.c.h.b16 %v312
    %v483 = vunpack.c.l.b16 %v313
    %v484 = vunpack.c.h.b16 %v313
    %v485 = vunpack.c.l.b16 %v314
    %v486 = vunpack.c.h.b16 %v314
    %v487 = vunpack.c.l.b16 %v315
    %v488 = vunpack.c.h.b16 %v315
    %v489 = vunpack.c.l.b16 %v316
    %v490 = vunpack.c.h.b16 %v316
    %v491 = vunpack.c.l.b16 %v317
    %v492 = vunpack.c.h.b16 %v317
    %v493 = vunpack.c.l.b16 %v318
    %v494 = vunpack.c.h.b16 %v318
    %v495 = vunpack.c.l.b16 %v319
    %v496 = vunpack.c.h.b16 %v319
    %v497 = vunpack.c.l.b16 %v320
    %v498 = vunpack.c.h.b16 %v320
    %v499 = vunpack.c.l.b16 %v321
    %v500 = vunpack.c.h.b16 %v321
    %v501 = vunpack.c.l.b16 %v322
    %v502 = vunpack.c.h.b16 %v322
    %v503 = vunpack.c.l.b16 %v323
    %v504 = vunpack.c.h.b16 %v323
    %v505 = vunpack.c.l.b16 %v324
    %v506 = vunpack.c.h.b16 %v324
    %v507 = vunpack.c.l.b16 %v325
    %v508 = vunpack.c.h.b16 %v325
    %v509 = vunpack.c.l.b16 %v326
    %v510 = vunpack.c.h.b16 %v326
    %v511 = vunpack.c.l.b16 %v327
    %v512 = vunpack.c.h.b16 %v327
    %v513 = vunpack.c.l.b16 %v328
    %v514 = vunpack.c.h.b16 %v328
    %v515 = vunpack.c.l.b16 %v329
    %v516 = vunpack.c.h.b16 %v329
    %v517 = vunpack.c.l.b16 %v330
    %v518 = vunpack.c.h.b16 %v330
    %v519 = vunpack.c.l.b16 %v331
    %v520 = vunpack.c.h.b16 %v331
    %v521 = vunpack.c.l.b16 %v332
    %v522 = vunpack.c.h.b16 %v332
    %v523 = vunpack.c.l.b16 %v333
    %v524 = vunpack.c.h.b16 %v333
    %v525 = vunpack.c.l.b16 %v334
    %v526 = vunpack.c.h.b16 %v334
    %v527 = vunpack.c.l.b16 %v335
    %v528 = vunpack.c.h.b16 %v335
    %v529 = vunpack.c.l.b16 %v336
    %v530 = vunpack.c.h.b16 %v336
    %v531 = vunpack.c.l.b16 %v337
    %v532 = vunpack.c.h.b16 %v337
    %v533 = vunpack.c.l.b16 %v338
    %v534 = vunpack.c.h.b16 %v338
    %v535 = vunpack.c.l.b16 %v339
    %v536 = vunpack.c.h.b16 %v339
    %v537 = vunpack.c.l.b16 %v340
    %v538 = vunpack.c.h.b16 %v340
    %v539 = vunpack.c.l.b16 %v341
    %v540 = vunpack.c.h.b16 %v341
    %v541 = vunpack.c.l.b16 %v342
    %v542 = vunpack.c.h.b16 %v342
    %v543 = vunpack.c.l.b16 %v343
    %v544 = vunpack.c.h.b16 %v343
    %v545 = vunpack.c.l.b16 %v344
    %v546 = vunpack.c.h.b16 %v344
    %v547 = vunpack.c.l.b16 %v345
    %v548 = vunpack.c.h.b16 %v345
    %v549 = vunpack.c.l.b16 %v346
    %v550 = vunpack.c.h.b16 %v346
    %v551 = vunpack.c.l.b16 %v347
    %v552 = vunpack.c.h.b16 %v347
    %v553 = vunpack.c.l.b16 %v348
    %v554 = vunpack.c.h.b16 %v348
    %v555 = vunpack.c.l.b16 %v349
    %v556 = vunpack.c.h.b16 %v349
    %v557 = vunpack.c.l.b16 %v350
    %v558 = vunpack.c.h.b16 %v350
    %v559 = vunpack.c.l.b16 %v351
    %v560 = vunpack.c.h.b16 %v351
    %v561 = vunpack.c.l.b16 %v352
    %v562 = vunpack.c.h.b16 %v352
    %v563 = vunpack.c.l.b16 %v353
    %v564 = vunpack.c.h.b16 %v353
    %v565 = vunpack.c.l.b16 %v354
    %v566 = vunpack.c.h.b16 %v354
    %v567 = vunpack.c.l.b16 %v355
    %v568 = vunpack.c.h.b16 %v355
    %v569 = vunpack.c.l.b16 %v356
    %v570 = vunpack.c.h.b16 %v356
    %v571 = vpack.c.b16 %v447, %v443
    %v572 = vpack.c.b16 %v448, %v444
    %v573 = vpack.c.b16 %v449, %v445
    %v574 = vpack.c.b16 %v450, %v446
    %v575 = vpack.c.b16 %v455, %v451
    %v576 = vpack.c.b16 %v456, %v452
    %v577 = vpack.c.b16 %v457, %v453
    %v578 = vpack.c.b16 %v458, %v454
    %v579 = vpack.c.b16 %v463, %v459
    %v580 = vpack.c.b16 %v464, %v460
    %v581 = vpack.c.b16 %v465, %v461
    %v582 = vpack.c.b16 %v466, %v462
    %v583 = vpack.c.b16 %v471, %v467
    %v584 = vpack.c.b16 %v472, %v468
    %v585 = vpack.c.b16 %v473, %v469
    %v586 = vpack.c.b16 %v474, %v470
    %v587 = vpack.c.b16 %v479, %v475
    %v588 = vpack.c.b16 %v480, %v476
    %v589 = vpack.c.b16 %v481, %v477
    %v590 = vpack.c.b16 %v482, %v478
    %v591 = vpack.c.b16 %v487, %v483
    %v592 = vpack.c.b16 %v488, %v484
    %v593 = vpack.c.b16 %v489, %v485
    %v594 = vpack.c.b16 %v490, %v486
    %v595 = vpack.c.b16 %v495, %v491
    %v596 = vpack.c.b16 %v496, %v492
    %v597 = vpack.c.b16 %v497, %v493
    %v598 = vpack.c.b16 %v498, %v494
    %v599 = vpack.c.b16 %v503, %v499
    %v600 = vpack.c.b16 %v504, %v500
    %v601 = vpack.c.b16 %v505, %v501
    %v602 = vpack.c.b16 %v506, %v502
    %v603 = vpack.c.b16 %v511, %v507
    %v604 = vpack.c.b16 %v512, %v508
    %v605 = vpack.c.b16 %v513, %v509
    %v606 = vpack.c.b16 %v514, %v510
    %v607 = vpack.c.b16 %v519, %v515
    %v608 = vpack.c.b16 %v520, %v516
    %v609 = vpack.c.b16 %v521, %v517
    %v610 = vpack.c.b16 %v522, %v518
    %v611 = vpack.c.b16 %v527, %v523
    %v612 = vpack.c.b16 %v528, %v524
    %v613 = vpack.c.b16 %v529, %v525
    %v614 = vpack.c.b16 %v530, %v526
    %v615 = vpack.c.b16 %v535, %v531
    %v616 = vpack.c.b16 %v536, %v532
    %v617 = vpack.c.b16 %v537, %v533
    %v618 = vpack.c.b16 %v538, %v534
    %v619 = vpack.c.b16 %v543, %v539
    %v620 = vpack.c.b16 %v544, %v540
    %v621 = vpack.c.b16 %v545, %v541
    %v622 = vpack.c.b16 %v546, %v542
    %v623 = vpack.c.b16 %v551, %v547
    %v624 = vpack.c.b16 %v552, %v548
    %v625 = vpack.c.b16 %v553, %v549
    %v626 = vpack.c.b16 %v554, %v550
    %v627 = vpack.c.b16 %v559, %v555
    %v628 = vpack.c.b16 %v560, %v556
    %v629 = vpack.c.b16 %v561, %v557
    %v630 = vpack.c.b16 %v562, %v558
    %v631 = vpack.c.b16 %v567, %v563
    %v632 = vpack.c.b16 %v568, %v564
    %v633 = vpack.c.b16 %v569, %v565
    %v634 = vpack.c.b16 %v570, %v566
    %699 = vmatprep.subr.bf16.mxu0 %v572
    %700 = vmatpush1.bf16.msra.mxu0 %v571
    %701 = vmatprep.subr.bf16.mxu0 %v576
    %702 = vmatpush1.bf16.msra.mxu0 %v575
    %703 = vmatprep.subr.bf16.mxu0 %v580
    %704 = vmatpush1.bf16.msra.mxu0 %v579
    %705 = vmatprep.subr.bf16.mxu0 %v584
    %706 = vmatpush1.bf16.msra.mxu0 %v583
    %707 = vmatprep.subr.bf16.mxu0 %v588
    %708 = vmatpush1.bf16.msra.mxu0 %v587
    %709 = vmatprep.subr.bf16.mxu0 %v592
    %710 = vmatpush1.bf16.msra.mxu0 %v591
    %711 = vmatprep.subr.bf16.mxu0 %v596
    %712 = vmatpush1.bf16.msra.mxu0 %v595
    %713 = vmatprep.subr.bf16.mxu0 %v600
    %714 = vmatpush1.bf16.msra.mxu0 %v599
    %715 = vmatprep.subr.bf16.mxu0 %v604
    %716 = vmatpush1.bf16.msra.mxu0 %v603
    %717 = vmatprep.subr.bf16.mxu0 %v608
    %718 = vmatpush1.bf16.msra.mxu0 %v607
    %719 = vmatprep.subr.bf16.mxu0 %v612
    %720 = vmatpush1.bf16.msra.mxu0 %v611
    %721 = vmatprep.subr.bf16.mxu0 %v616
    %722 = vmatpush1.bf16.msra.mxu0 %v615
    %723 = vmatprep.subr.bf16.mxu0 %v620
    %724 = vmatpush1.bf16.msra.mxu0 %v619
    %725 = vmatprep.subr.bf16.mxu0 %v624
    %726 = vmatpush1.bf16.msra.mxu0 %v623
    %727 = vmatprep.subr.bf16.mxu0 %v628
    %728 = vmatpush1.bf16.msra.mxu0 %v627
    %729 = vmatprep.subr.bf16.mxu0 %v632
    %730 = vmatpush1.bf16.msra.mxu0 %v631
    %731 = vmatprep.mubr.bf16.mxu0 %v292
    %732 = vmatmul.mubr.bf16.gmra.mrb[0].mxu0 %v291
    %v733 = vpop.f32.mrb[0].mxu0
    %v734 = vadd.f32 %v362, %v733
    %v735 = vpop.f32.mrb[0].mxu0
    %v736 = vadd.f32 %v366, %v735
    %v737 = vpop.f32.mrb[0].mxu0
    %v738 = vpop.f32.mrb[0].mxu0
    %739 = vdwg.mxu0
    %740 = vmatprep.subr.bf16.mxu0 %v574
    %741 = vmatpush1.bf16.msra.mxu0 %v573
    %742 = vmatprep.subr.bf16.mxu0 %v578
    %743 = vmatpush1.bf16.msra.mxu0 %v577
    %744 = vmatprep.subr.bf16.mxu0 %v582
    %745 = vmatpush1.bf16.msra.mxu0 %v581
    %746 = vmatprep.subr.bf16.mxu0 %v586
    %747 = vmatpush1.bf16.msra.mxu0 %v585
    %748 = vmatprep.subr.bf16.mxu0 %v590
    %749 = vmatpush1.bf16.msra.mxu0 %v589
    %750 = vmatprep.subr.bf16.mxu0 %v594
    %751 = vmatpush1.bf16.msra.mxu0 %v593
    %752 = vmatprep.subr.bf16.mxu0 %v598
    %753 = vmatpush1.bf16.msra.mxu0 %v597
    %754 = vmatprep.subr.bf16.mxu0 %v602
    %755 = vmatpush1.bf16.msra.mxu0 %v601
    %756 = vmatprep.subr.bf16.mxu0 %v606
    %757 = vmatpush1.bf16.msra.mxu0 %v605
    %758 = vmatprep.subr.bf16.mxu0 %v610
    %759 = vmatpush1.bf16.msra.mxu0 %v609
    %760 = vmatprep.subr.bf16.mxu0 %v614
    %761 = vmatpush1.bf16.msra.mxu0 %v613
    %762 = vmatprep.subr.bf16.mxu0 %v618
    %763 = vmatpush1.bf16.msra.mxu0 %v617
    %764 = vmatprep.subr.bf16.mxu0 %v622
    %765 = vmatpush1.bf16.msra.mxu0 %v621
    %766 = vmatprep.subr.bf16.mxu0 %v626
    %767 = vmatpush1.bf16.msra.mxu0 %v625
    %768 = vmatprep.subr.bf16.mxu0 %v630
    %769 = vmatpush1.bf16.msra.mxu0 %v629
    %770 = vmatprep.subr.bf16.mxu0 %v634
    %771 = vmatpush1.bf16.msra.mxu0 %v633
    %772 = vmatprep.mubr.bf16.mxu0 %v292
    %773 = vmatmul.mubr.bf16.gmra.mrb[0].mxu0 %v291
    %v774 = vpop.f32.mrb[0].mxu0
    %v775 = vadd.f32 %v370, %v774
    %v776 = vpop.f32.mrb[0].mxu0
    %v777 = vadd.f32 %v374, %v776
    %v778 = vpop.f32.mrb[0].mxu0
    %v779 = vpop.f32.mrb[0].mxu0
    %780 = vdwg.mxu0
    %v781 = vtanh.pop %v734
    %v782 = vtanh.pop %v736
    %v783 = vtanh.pop %v775
    %v784 = vtanh.pop %v777
    %v785 = vpack.c.bf16 %v781, %v781
    %v786 = vpack.c.bf16 %v782, %v782
    %v787 = vpack.c.bf16 %v783, %v783
    %v788 = vpack.c.bf16 %v784, %v784
    %v789 = vld [vmem:[#allocation8] sm:$0xff]
    %v790 = vld [vmem:[#allocation8 + $0x8] sm:$0xff]
    %v791 = vld [vmem:[#allocation8 + $0x10] sm:$0xff]
    %v792 = vld [vmem:[#allocation8 + $0x18] sm:$0xff]
    %v793 = vld [vmem:[#allocation8 + $0x20] sm:$0xff]
    %v794 = vld [vmem:[#allocation8 + $0x28] sm:$0xff]
    %v795 = vld [vmem:[#allocation8 + $0x30] sm:$0xff]
    %v796 = vld [vmem:[#allocation8 + $0x38] sm:$0xff]
    %v797 = vld [vmem:[#allocation8 + $0x40] sm:$0xff]
    %v798 = vld [vmem:[#allocation8 + $0x48] sm:$0xff]
    %v799 = vld [vmem:[#allocation8 + $0x50] sm:$0xff]
    %v800 = vld [vmem:[#allocation8 + $0x58] sm:$0xff]
    %v801 = vld [vmem:[#allocation8 + $0x60] sm:$0xff]
    %v802 = vld [vmem:[#allocation8 + $0x68] sm:$0xff]
    %v803 = vld [vmem:[#allocation8 + $0x70] sm:$0xff]
    %v804 = vld [vmem:[#allocation8 + $0x78] sm:$0xff]
    %v805 = vld [vmem:[#allocation8 + $0x80] sm:$0xff]
    %v806 = vld [vmem:[#allocation8 + $0x88] sm:$0xff]
    %v807 = vld [vmem:[#allocation8 + $0x90] sm:$0xff]
    %v808 = vld [vmem:[#allocation8 + $0x98] sm:$0xff]
    %v809 = vld [vmem:[#allocation8 + $0xa0] sm:$0xff]
    %v810 = vld [vmem:[#allocation8 + $0xa8] sm:$0xff]
    %v811 = vld [vmem:[#allocation8 + $0xb0] sm:$0xff]
    %v812 = vld [vmem:[#allocation8 + $0xb8] sm:$0xff]
    %v813 = vld [vmem:[#allocation8 + $0xc0] sm:$0xff]
    %v814 = vld [vmem:[#allocation8 + $0xc8] sm:$0xff]
    %v815 = vld [vmem:[#allocation8 + $0xd0] sm:$0xff]
    %v816 = vld [vmem:[#allocation8 + $0xd8] sm:$0xff]
    %v817 = vld [vmem:[#allocation8 + $0xe0] sm:$0xff]
    %v818 = vld [vmem:[#allocation8 + $0xe8] sm:$0xff]
    %v819 = vld [vmem:[#allocation8 + $0xf0] sm:$0xff]
    %v820 = vld [vmem:[#allocation8 + $0xf8] sm:$0xff]
    %v821 = vld [vmem:[#allocation8 + $0x100] sm:$0xff]
    %v822 = vld [vmem:[#allocation8 + $0x108] sm:$0xff]
    %v823 = vld [vmem:[#allocation8 + $0x110] sm:$0xff]
    %v824 = vld [vmem:[#allocation8 + $0x118] sm:$0xff]
    %v825 = vld [vmem:[#allocation8 + $0x120] sm:$0xff]
    %v826 = vld [vmem:[#allocation8 + $0x128] sm:$0xff]
    %v827 = vld [vmem:[#allocation8 + $0x130] sm:$0xff]
    %v828 = vld [vmem:[#allocation8 + $0x138] sm:$0xff]
    %v829 = vld [vmem:[#allocation8 + $0x140] sm:$0xff]
    %v830 = vld [vmem:[#allocation8 + $0x148] sm:$0xff]
    %v831 = vld [vmem:[#allocation8 + $0x150] sm:$0xff]
    %v832 = vld [vmem:[#allocation8 + $0x158] sm:$0xff]
    %v833 = vld [vmem:[#allocation8 + $0x160] sm:$0xff]
    %v834 = vld [vmem:[#allocation8 + $0x168] sm:$0xff]
    %v835 = vld [vmem:[#allocation8 + $0x170] sm:$0xff]
    %v836 = vld [vmem:[#allocation8 + $0x178] sm:$0xff]
    %v837 = vld [vmem:[#allocation8 + $0x180] sm:$0xff]
    %v838 = vld [vmem:[#allocation8 + $0x188] sm:$0xff]
    %v839 = vld [vmem:[#allocation8 + $0x190] sm:$0xff]
    %v840 = vld [vmem:[#allocation8 + $0x198] sm:$0xff]
    %v841 = vld [vmem:[#allocation8 + $0x1a0] sm:$0xff]
    %v842 = vld [vmem:[#allocation8 + $0x1a8] sm:$0xff]
    %v843 = vld [vmem:[#allocation8 + $0x1b0] sm:$0xff]
    %v844 = vld [vmem:[#allocation8 + $0x1b8] sm:$0xff]
    %v845 = vld [vmem:[#allocation8 + $0x1c0] sm:$0xff]
    %v846 = vld [vmem:[#allocation8 + $0x1c8] sm:$0xff]
    %v847 = vld [vmem:[#allocation8 + $0x1d0] sm:$0xff]
    %v848 = vld [vmem:[#allocation8 + $0x1d8] sm:$0xff]
    %v849 = vld [vmem:[#allocation8 + $0x1e0] sm:$0xff]
    %v850 = vld [vmem:[#allocation8 + $0x1e8] sm:$0xff]
    %v851 = vld [vmem:[#allocation8 + $0x1f0] sm:$0xff]
    %v852 = vld [vmem:[#allocation8 + $0x1f8] sm:$0xff]
    %v853 = vld [vmem:[#allocation8 + $0x200] sm:$0xff]
    %v854 = vld [vmem:[#allocation8 + $0x208] sm:$0xff]
    %v855 = vld [vmem:[#allocation8 + $0x210] sm:$0xff]
    %v856 = vld [vmem:[#allocation8 + $0x218] sm:$0xff]
    %v857 = vld [vmem:[#allocation8 + $0x220] sm:$0xff]
    %v858 = vld [vmem:[#allocation8 + $0x228] sm:$0xff]
    %v859 = vld [vmem:[#allocation8 + $0x230] sm:$0xff]
    %v860 = vld [vmem:[#allocation8 + $0x238] sm:$0xff]
    %v861 = vld [vmem:[#allocation8 + $0x240] sm:$0xff]
    %v862 = vld [vmem:[#allocation8 + $0x248] sm:$0xff]
    %v863 = vld [vmem:[#allocation8 + $0x250] sm:$0xff]
    %v864 = vld [vmem:[#allocation8 + $0x258] sm:$0xff]
    %v865 = vld [vmem:[#allocation8 + $0x260] sm:$0xff]
    %v866 = vld [vmem:[#allocation8 + $0x268] sm:$0xff]
    %v867 = vld [vmem:[#allocation8 + $0x270] sm:$0xff]
    %v868 = vld [vmem:[#allocation8 + $0x278] sm:$0xff]
    %v869 = vld [vmem:[#allocation8 + $0x280] sm:$0xff]
    %v870 = vld [vmem:[#allocation8 + $0x288] sm:$0xff]
    %v871 = vld [vmem:[#allocation8 + $0x290] sm:$0xff]
    %v872 = vld [vmem:[#allocation8 + $0x298] sm:$0xff]
    %v873 = vld [vmem:[#allocation8 + $0x2a0] sm:$0xff]
    %v874 = vld [vmem:[#allocation8 + $0x2a8] sm:$0xff]
    %v875 = vld [vmem:[#allocation8 + $0x2b0] sm:$0xff]
    %v876 = vld [vmem:[#allocation8 + $0x2b8] sm:$0xff]
    %v877 = vld [vmem:[#allocation8 + $0x2c0] sm:$0xff]
    %v878 = vld [vmem:[#allocation8 + $0x2c8] sm:$0xff]
    %v879 = vld [vmem:[#allocation8 + $0x2d0] sm:$0xff]
    %v880 = vld [vmem:[#allocation8 + $0x2d8] sm:$0xff]
    %v881 = vld [vmem:[#allocation8 + $0x2e0] sm:$0xff]
    %v882 = vld [vmem:[#allocation8 + $0x2e8] sm:$0xff]
    %v883 = vld [vmem:[#allocation8 + $0x2f0] sm:$0xff]
    %v884 = vld [vmem:[#allocation8 + $0x2f8] sm:$0xff]
    %v885 = vld [vmem:[#allocation8 + $0x300] sm:$0xff]
    %v886 = vld [vmem:[#allocation8 + $0x308] sm:$0xff]
    %v887 = vld [vmem:[#allocation8 + $0x310] sm:$0xff]
    %v888 = vld [vmem:[#allocation8 + $0x318] sm:$0xff]
    %v889 = vld [vmem:[#allocation8 + $0x320] sm:$0xff]
    %v890 = vld [vmem:[#allocation8 + $0x328] sm:$0xff]
    %v891 = vld [vmem:[#allocation8 + $0x330] sm:$0xff]
    %v892 = vld [vmem:[#allocation8 + $0x338] sm:$0xff]
    %v893 = vld [vmem:[#allocation8 + $0x340] sm:$0xff]
    %v894 = vld [vmem:[#allocation8 + $0x348] sm:$0xff]
    %v895 = vld [vmem:[#allocation8 + $0x350] sm:$0xff]
    %v896 = vld [vmem:[#allocation8 + $0x358] sm:$0xff]
    %v897 = vld [vmem:[#allocation8 + $0x360] sm:$0xff]
    %v898 = vld [vmem:[#allocation8 + $0x368] sm:$0xff]
    %v899 = vld [vmem:[#allocation8 + $0x370] sm:$0xff]
    %v900 = vld [vmem:[#allocation8 + $0x378] sm:$0xff]
    %v901 = vld [vmem:[#allocation8 + $0x380] sm:$0xff]
    %v902 = vld [vmem:[#allocation8 + $0x388] sm:$0xff]
    %v903 = vld [vmem:[#allocation8 + $0x390] sm:$0xff]
    %v904 = vld [vmem:[#allocation8 + $0x398] sm:$0xff]
    %v905 = vld [vmem:[#allocation8 + $0x3a0] sm:$0xff]
    %v906 = vld [vmem:[#allocation8 + $0x3a8] sm:$0xff]
    %v907 = vld [vmem:[#allocation8 + $0x3b0] sm:$0xff]
    %v908 = vld [vmem:[#allocation8 + $0x3b8] sm:$0xff]
    %v909 = vld [vmem:[#allocation8 + $0x3c0] sm:$0xff]
    %v910 = vld [vmem:[#allocation8 + $0x3c8] sm:$0xff]
    %v911 = vld [vmem:[#allocation8 + $0x3d0] sm:$0xff]
    %v912 = vld [vmem:[#allocation8 + $0x3d8] sm:$0xff]
    %v913 = vld [vmem:[#allocation8 + $0x3e0] sm:$0xff]
    %v914 = vld [vmem:[#allocation8 + $0x3e8] sm:$0xff]
    %v915 = vld [vmem:[#allocation8 + $0x3f0] sm:$0xff]
    %v916 = vld [vmem:[#allocation8 + $0x3f8] sm:$0xff]
    %v917 = vld [vmem:[%s6] sm:$0xf]
    %v919 = vlaneseq
    %v920 = vshrl.u32 %v919, 7
    %v921 = vsub.s32 0, %v920
    %v922 = vrot.slane %v917, %v921
    %v923 = vlaneseq
    %v924 = vshrl.u32 %v923, 7
    %v925 = vsub.s32 1, %v924
    %v926 = vrot.slane %v917, %v925
    %v927 = vlaneseq
    %v928 = vshrl.u32 %v927, 7
    %v929 = vsub.s32 2, %v928
    %v930 = vrot.slane %v917, %v929
    %v931 = vlaneseq
    %v932 = vshrl.u32 %v931, 7
    %v933 = vsub.s32 3, %v932
    %v934 = vrot.slane %v917, %v933
    %v1067 = vunpack.c.l.b16 %v789
    %v1068 = vunpack.c.h.b16 %v789
    %v1069 = vunpack.c.l.b16 %v790
    %v1070 = vunpack.c.h.b16 %v790
    %v1071 = vunpack.c.l.b16 %v791
    %v1072 = vunpack.c.h.b16 %v791
    %v1073 = vunpack.c.l.b16 %v792
    %v1074 = vunpack.c.h.b16 %v792
    %v1075 = vunpack.c.l.b16 %v793
    %v1076 = vunpack.c.h.b16 %v793
    %v1077 = vunpack.c.l.b16 %v794
    %v1078 = vunpack.c.h.b16 %v794
    %v1079 = vunpack.c.l.b16 %v795
    %v1080 = vunpack.c.h.b16 %v795
    %v1081 = vunpack.c.l.b16 %v796
    %v1082 = vunpack.c.h.b16 %v796
    %v1083 = vunpack.c.l.b16 %v797
    %v1084 = vunpack.c.h.b16 %v797
    %v1085 = vunpack.c.l.b16 %v798
    %v1086 = vunpack.c.h.b16 %v798
    %v1087 = vunpack.c.l.b16 %v799
    %v1088 = vunpack.c.h.b16 %v799
    %v1089 = vunpack.c.l.b16 %v800
    %v1090 = vunpack.c.h.b16 %v800
    %v1091 = vunpack.c.l.b16 %v801
    %v1092 = vunpack.c.h.b16 %v801
    %v1093 = vunpack.c.l.b16 %v802
    %v1094 = vunpack.c.h.b16 %v802
    %v1095 = vunpack.c.l.b16 %v803
    %v1096 = vunpack.c.h.b16 %v803
    %v1097 = vunpack.c.l.b16 %v804
    %v1098 = vunpack.c.h.b16 %v804
    %v1099 = vunpack.c.l.b16 %v805
    %v1100 = vunpack.c.h.b16 %v805
    %v1101 = vunpack.c.l.b16 %v806
    %v1102 = vunpack.c.h.b16 %v806
    %v1103 = vunpack.c.l.b16 %v807
    %v1104 = vunpack.c.h.b16 %v807
    %v1105 = vunpack.c.l.b16 %v808
    %v1106 = vunpack.c.h.b16 %v808
    %v1107 = vunpack.c.l.b16 %v809
    %v1108 = vunpack.c.h.b16 %v809
    %v1109 = vunpack.c.l.b16 %v810
    %v1110 = vunpack.c.h.b16 %v810
    %v1111 = vunpack.c.l.b16 %v811
    %v1112 = vunpack.c.h.b16 %v811
    %v1113 = vunpack.c.l.b16 %v812
    %v1114 = vunpack.c.h.b16 %v812
    %v1115 = vunpack.c.l.b16 %v813
    %v1116 = vunpack.c.h.b16 %v813
    %v1117 = vunpack.c.l.b16 %v814
    %v1118 = vunpack.c.h.b16 %v814
    %v1119 = vunpack.c.l.b16 %v815
    %v1120 = vunpack.c.h.b16 %v815
    %v1121 = vunpack.c.l.b16 %v816
    %v1122 = vunpack.c.h.b16 %v816
    %v1123 = vunpack.c.l.b16 %v817
    %v1124 = vunpack.c.h.b16 %v817
    %v1125 = vunpack.c.l.b16 %v818
    %v1126 = vunpack.c.h.b16 %v818
    %v1127 = vunpack.c.l.b16 %v819
    %v1128 = vunpack.c.h.b16 %v819
    %v1129 = vunpack.c.l.b16 %v820
    %v1130 = vunpack.c.h.b16 %v820
    %v1131 = vunpack.c.l.b16 %v821
    %v1132 = vunpack.c.h.b16 %v821
    %v1133 = vunpack.c.l.b16 %v822
    %v1134 = vunpack.c.h.b16 %v822
    %v1135 = vunpack.c.l.b16 %v823
    %v1136 = vunpack.c.h.b16 %v823
    %v1137 = vunpack.c.l.b16 %v824
    %v1138 = vunpack.c.h.b16 %v824
    %v1139 = vunpack.c.l.b16 %v825
    %v1140 = vunpack.c.h.b16 %v825
    %v1141 = vunpack.c.l.b16 %v826
    %v1142 = vunpack.c.h.b16 %v826
    %v1143 = vunpack.c.l.b16 %v827
    %v1144 = vunpack.c.h.b16 %v827
    %v1145 = vunpack.c.l.b16 %v828
    %v1146 = vunpack.c.h.b16 %v828
    %v1147 = vunpack.c.l.b16 %v829
    %v1148 = vunpack.c.h.b16 %v829
    %v1149 = vunpack.c.l.b16 %v830
    %v1150 = vunpack.c.h.b16 %v830
    %v1151 = vunpack.c.l.b16 %v831
    %v1152 = vunpack.c.h.b16 %v831
    %v1153 = vunpack.c.l.b16 %v832
    %v1154 = vunpack.c.h.b16 %v832
    %v1155 = vunpack.c.l.b16 %v833
    %v1156 = vunpack.c.h.b16 %v833
    %v1157 = vunpack.c.l.b16 %v834
    %v1158 = vunpack.c.h.b16 %v834
    %v1159 = vunpack.c.l.b16 %v835
    %v1160 = vunpack.c.h.b16 %v835
    %v1161 = vunpack.c.l.b16 %v836
    %v1162 = vunpack.c.h.b16 %v836
    %v1163 = vunpack.c.l.b16 %v837
    %v1164 = vunpack.c.h.b16 %v837
    %v1165 = vunpack.c.l.b16 %v838
    %v1166 = vunpack.c.h.b16 %v838
    %v1167 = vunpack.c.l.b16 %v839
    %v1168 = vunpack.c.h.b16 %v839
    %v1169 = vunpack.c.l.b16 %v840
    %v1170 = vunpack.c.h.b16 %v840
    %v1171 = vunpack.c.l.b16 %v841
    %v1172 = vunpack.c.h.b16 %v841
    %v1173 = vunpack.c.l.b16 %v842
    %v1174 = vunpack.c.h.b16 %v842
    %v1175 = vunpack.c.l.b16 %v843
    %v1176 = vunpack.c.h.b16 %v843
    %v1177 = vunpack.c.l.b16 %v844
    %v1178 = vunpack.c.h.b16 %v844
    %v1179 = vunpack.c.l.b16 %v845
    %v1180 = vunpack.c.h.b16 %v845
    %v1181 = vunpack.c.l.b16 %v846
    %v1182 = vunpack.c.h.b16 %v846
    %v1183 = vunpack.c.l.b16 %v847
    %v1184 = vunpack.c.h.b16 %v847
    %v1185 = vunpack.c.l.b16 %v848
    %v1186 = vunpack.c.h.b16 %v848
    %v1187 = vunpack.c.l.b16 %v849
    %v1188 = vunpack.c.h.b16 %v849
    %v1189 = vunpack.c.l.b16 %v850
    %v1190 = vunpack.c.h.b16 %v850
    %v1191 = vunpack.c.l.b16 %v851
    %v1192 = vunpack.c.h.b16 %v851
    %v1193 = vunpack.c.l.b16 %v852
    %v1194 = vunpack.c.h.b16 %v852
    %v1195 = vunpack.c.l.b16 %v853
    %v1196 = vunpack.c.h.b16 %v853
    %v1197 = vunpack.c.l.b16 %v854
    %v1198 = vunpack.c.h.b16 %v854
    %v1199 = vunpack.c.l.b16 %v855
    %v1200 = vunpack.c.h.b16 %v855
    %v1201 = vunpack.c.l.b16 %v856
    %v1202 = vunpack.c.h.b16 %v856
    %v1203 = vunpack.c.l.b16 %v857
    %v1204 = vunpack.c.h.b16 %v857
    %v1205 = vunpack.c.l.b16 %v858
    %v1206 = vunpack.c.h.b16 %v858
    %v1207 = vunpack.c.l.b16 %v859
    %v1208 = vunpack.c.h.b16 %v859
    %v1209 = vunpack.c.l.b16 %v860
    %v1210 = vunpack.c.h.b16 %v860
    %v1211 = vunpack.c.l.b16 %v861
    %v1212 = vunpack.c.h.b16 %v861
    %v1213 = vunpack.c.l.b16 %v862
    %v1214 = vunpack.c.h.b16 %v862
    %v1215 = vunpack.c.l.b16 %v863
    %v1216 = vunpack.c.h.b16 %v863
    %v1217 = vunpack.c.l.b16 %v864
    %v1218 = vunpack.c.h.b16 %v864
    %v1219 = vunpack.c.l.b16 %v865
    %v1220 = vunpack.c.h.b16 %v865
    %v1221 = vunpack.c.l.b16 %v866
    %v1222 = vunpack.c.h.b16 %v866
    %v1223 = vunpack.c.l.b16 %v867
    %v1224 = vunpack.c.h.b16 %v867
    %v1225 = vunpack.c.l.b16 %v868
    %v1226 = vunpack.c.h.b16 %v868
    %v1227 = vunpack.c.l.b16 %v869
    %v1228 = vunpack.c.h.b16 %v869
    %v1229 = vunpack.c.l.b16 %v870
    %v1230 = vunpack.c.h.b16 %v870
    %v1231 = vunpack.c.l.b16 %v871
    %v1232 = vunpack.c.h.b16 %v871
    %v1233 = vunpack.c.l.b16 %v872
    %v1234 = vunpack.c.h.b16 %v872
    %v1235 = vunpack.c.l.b16 %v873
    %v1236 = vunpack.c.h.b16 %v873
    %v1237 = vunpack.c.l.b16 %v874
    %v1238 = vunpack.c.h.b16 %v874
    %v1239 = vunpack.c.l.b16 %v875
    %v1240 = vunpack.c.h.b16 %v875
    %v1241 = vunpack.c.l.b16 %v876
    %v1242 = vunpack.c.h.b16 %v876
    %v1243 = vunpack.c.l.b16 %v877
    %v1244 = vunpack.c.h.b16 %v877
    %v1245 = vunpack.c.l.b16 %v878
    %v1246 = vunpack.c.h.b16 %v878
    %v1247 = vunpack.c.l.b16 %v879
    %v1248 = vunpack.c.h.b16 %v879
    %v1249 = vunpack.c.l.b16 %v880
    %v1250 = vunpack.c.h.b16 %v880
    %v1251 = vunpack.c.l.b16 %v881
    %v1252 = vunpack.c.h.b16 %v881
    %v1253 = vunpack.c.l.b16 %v882
    %v1254 = vunpack.c.h.b16 %v882
    %v1255 = vunpack.c.l.b16 %v883
    %v1256 = vunpack.c.h.b16 %v883
    %v1257 = vunpack.c.l.b16 %v884
    %v1258 = vunpack.c.h.b16 %v884
    %v1259 = vunpack.c.l.b16 %v885
    %v1260 = vunpack.c.h.b16 %v885
    %v1261 = vunpack.c.l.b16 %v886
    %v1262 = vunpack.c.h.b16 %v886
    %v1263 = vunpack.c.l.b16 %v887
    %v1264 = vunpack.c.h.b16 %v887
    %v1265 = vunpack.c.l.b16 %v888
    %v1266 = vunpack.c.h.b16 %v888
    %v1267 = vunpack.c.l.b16 %v889
    %v1268 = vunpack.c.h.b16 %v889
    %v1269 = vunpack.c.l.b16 %v890
    %v1270 = vunpack.c.h.b16 %v890
    %v1271 = vunpack.c.l.b16 %v891
    %v1272 = vunpack.c.h.b16 %v891
    %v1273 = vunpack.c.l.b16 %v892
    %v1274 = vunpack.c.h.b16 %v892
    %v1275 = vunpack.c.l.b16 %v893
    %v1276 = vunpack.c.h.b16 %v893
    %v1277 = vunpack.c.l.b16 %v894
    %v1278 = vunpack.c.h.b16 %v894
    %v1279 = vunpack.c.l.b16 %v895
    %v1280 = vunpack.c.h.b16 %v895
    %v1281 = vunpack.c.l.b16 %v896
    %v1282 = vunpack.c.h.b16 %v896
    %v1283 = vunpack.c.l.b16 %v897
    %v1284 = vunpack.c.h.b16 %v897
    %v1285 = vunpack.c.l.b16 %v898
    %v1286 = vunpack.c.h.b16 %v898
    %v1287 = vunpack.c.l.b16 %v899
    %v1288 = vunpack.c.h.b16 %v899
    %v1289 = vunpack.c.l.b16 %v900
    %v1290 = vunpack.c.h.b16 %v900
    %v1291 = vunpack.c.l.b16 %v901
    %v1292 = vunpack.c.h.b16 %v901
    %v1293 = vunpack.c.l.b16 %v902
    %v1294 = vunpack.c.h.b16 %v902
    %v1295 = vunpack.c.l.b16 %v903
    %v1296 = vunpack.c.h.b16 %v903
    %v1297 = vunpack.c.l.b16 %v904
    %v1298 = vunpack.c.h.b16 %v904
    %v1299 = vunpack.c.l.b16 %v905
    %v1300 = vunpack.c.h.b16 %v905
    %v1301 = vunpack.c.l.b16 %v906
    %v1302 = vunpack.c.h.b16 %v906
    %v1303 = vunpack.c.l.b16 %v907
    %v1304 = vunpack.c.h.b16 %v907
    %v1305 = vunpack.c.l.b16 %v908
    %v1306 = vunpack.c.h.b16 %v908
    %v1307 = vunpack.c.l.b16 %v909
    %v1308 = vunpack.c.h.b16 %v909
    %v1309 = vunpack.c.l.b16 %v910
    %v1310 = vunpack.c.h.b16 %v910
    %v1311 = vunpack.c.l.b16 %v911
    %v1312 = vunpack.c.h.b16 %v911
    %v1313 = vunpack.c.l.b16 %v912
    %v1314 = vunpack.c.h.b16 %v912
    %v1315 = vunpack.c.l.b16 %v913
    %v1316 = vunpack.c.h.b16 %v913
    %v1317 = vunpack.c.l.b16 %v914
    %v1318 = vunpack.c.h.b16 %v914
    %v1319 = vunpack.c.l.b16 %v915
    %v1320 = vunpack.c.h.b16 %v915
    %v1321 = vunpack.c.l.b16 %v916
    %v1322 = vunpack.c.h.b16 %v916
    %v1323 = vpack.c.b16 %v1071, %v1067
    %v1324 = vpack.c.b16 %v1072, %v1068
    %v1325 = vpack.c.b16 %v1073, %v1069
    %v1326 = vpack.c.b16 %v1074, %v1070
    %v1327 = vpack.c.b16 %v1079, %v1075
    %v1328 = vpack.c.b16 %v1080, %v1076
    %v1329 = vpack.c.b16 %v1081, %v1077
    %v1330 = vpack.c.b16 %v1082, %v1078
    %v1331 = vpack.c.b16 %v1087, %v1083
    %v1332 = vpack.c.b16 %v1088, %v1084
    %v1333 = vpack.c.b16 %v1089, %v1085
    %v1334 = vpack.c.b16 %v1090, %v1086
    %v1335 = vpack.c.b16 %v1095, %v1091
    %v1336 = vpack.c.b16 %v1096, %v1092
    %v1337 = vpack.c.b16 %v1097, %v1093
    %v1338 = vpack.c.b16 %v1098, %v1094
    %v1339 = vpack.c.b16 %v1103, %v1099
    %v1340 = vpack.c.b16 %v1104, %v1100
    %v1341 = vpack.c.b16 %v1105, %v1101
    %v1342 = vpack.c.b16 %v1106, %v1102
    %v1343 = vpack.c.b16 %v1111, %v1107
    %v1344 = vpack.c.b16 %v1112, %v1108
    %v1345 = vpack.c.b16 %v1113, %v1109
    %v1346 = vpack.c.b16 %v1114, %v1110
    %v1347 = vpack.c.b16 %v1119, %v1115
    %v1348 = vpack.c.b16 %v1120, %v1116
    %v1349 = vpack.c.b16 %v1121, %v1117
    %v1350 = vpack.c.b16 %v1122, %v1118
    %v1351 = vpack.c.b16 %v1127, %v1123
    %v1352 = vpack.c.b16 %v1128, %v1124
    %v1353 = vpack.c.b16 %v1129, %v1125
    %v1354 = vpack.c.b16 %v1130, %v1126
    %v1355 = vpack.c.b16 %v1135, %v1131
    %v1356 = vpack.c.b16 %v1136, %v1132
    %v1357 = vpack.c.b16 %v1137, %v1133
    %v1358 = vpack.c.b16 %v1138, %v1134
    %v1359 = vpack.c.b16 %v1143, %v1139
    %v1360 = vpack.c.b16 %v1144, %v1140
    %v1361 = vpack.c.b16 %v1145, %v1141
    %v1362 = vpack.c.b16 %v1146, %v1142
    %v1363 = vpack.c.b16 %v1151, %v1147
    %v1364 = vpack.c.b16 %v1152, %v1148
    %v1365 = vpack.c.b16 %v1153, %v1149
    %v1366 = vpack.c.b16 %v1154, %v1150
    %v1367 = vpack.c.b16 %v1159, %v1155
    %v1368 = vpack.c.b16 %v1160, %v1156
    %v1369 = vpack.c.b16 %v1161, %v1157
    %v1370 = vpack.c.b16 %v1162, %v1158
    %v1371 = vpack.c.b16 %v1167, %v1163
    %v1372 = vpack.c.b16 %v1168, %v1164
    %v1373 = vpack.c.b16 %v1169, %v1165
    %v1374 = vpack.c.b16 %v1170, %v1166
    %v1375 = vpack.c.b16 %v1175, %v1171
    %v1376 = vpack.c.b16 %v1176, %v1172
    %v1377 = vpack.c.b16 %v1177, %v1173
    %v1378 = vpack.c.b16 %v1178, %v1174
    %v1379 = vpack.c.b16 %v1183, %v1179
    %v1380 = vpack.c.b16 %v1184, %v1180
    %v1381 = vpack.c.b16 %v1185, %v1181
    %v1382 = vpack.c.b16 %v1186, %v1182
    %v1383 = vpack.c.b16 %v1191, %v1187
    %v1384 = vpack.c.b16 %v1192, %v1188
    %v1385 = vpack.c.b16 %v1193, %v1189
    %v1386 = vpack.c.b16 %v1194, %v1190
    %v1387 = vpack.c.b16 %v1199, %v1195
    %v1388 = vpack.c.b16 %v1200, %v1196
    %v1389 = vpack.c.b16 %v1201, %v1197
    %v1390 = vpack.c.b16 %v1202, %v1198
    %v1391 = vpack.c.b16 %v1207, %v1203
    %v1392 = vpack.c.b16 %v1208, %v1204
    %v1393 = vpack.c.b16 %v1209, %v1205
    %v1394 = vpack.c.b16 %v1210, %v1206
    %v1395 = vpack.c.b16 %v1215, %v1211
    %v1396 = vpack.c.b16 %v1216, %v1212
    %v1397 = vpack.c.b16 %v1217, %v1213
    %v1398 = vpack.c.b16 %v1218, %v1214
    %v1399 = vpack.c.b16 %v1223, %v1219
    %v1400 = vpack.c.b16 %v1224, %v1220
    %v1401 = vpack.c.b16 %v1225, %v1221
    %v1402 = vpack.c.b16 %v1226, %v1222
    %v1403 = vpack.c.b16 %v1231, %v1227
    %v1404 = vpack.c.b16 %v1232, %v1228
    %v1405 = vpack.c.b16 %v1233, %v1229
    %v1406 = vpack.c.b16 %v1234, %v1230
    %v1407 = vpack.c.b16 %v1239, %v1235
    %v1408 = vpack.c.b16 %v1240, %v1236
    %v1409 = vpack.c.b16 %v1241, %v1237
    %v1410 = vpack.c.b16 %v1242, %v1238
    %v1411 = vpack.c.b16 %v1247, %v1243
    %v1412 = vpack.c.b16 %v1248, %v1244
    %v1413 = vpack.c.b16 %v1249, %v1245
    %v1414 = vpack.c.b16 %v1250, %v1246
    %v1415 = vpack.c.b16 %v1255, %v1251
    %v1416 = vpack.c.b16 %v1256, %v1252
    %v1417 = vpack.c.b16 %v1257, %v1253
    %v1418 = vpack.c.b16 %v1258, %v1254
    %v1419 = vpack.c.b16 %v1263, %v1259
    %v1420 = vpack.c.b16 %v1264, %v1260
    %v1421 = vpack.c.b16 %v1265, %v1261
    %v1422 = vpack.c.b16 %v1266, %v1262
    %v1423 = vpack.c.b16 %v1271, %v1267
    %v1424 = vpack.c.b16 %v1272, %v1268
    %v1425 = vpack.c.b16 %v1273, %v1269
    %v1426 = vpack.c.b16 %v1274, %v1270
    %v1427 = vpack.c.b16 %v1279, %v1275
    %v1428 = vpack.c.b16 %v1280, %v1276
    %v1429 = vpack.c.b16 %v1281, %v1277
    %v1430 = vpack.c.b16 %v1282, %v1278
    %v1431 = vpack.c.b16 %v1287, %v1283
    %v1432 = vpack.c.b16 %v1288, %v1284
    %v1433 = vpack.c.b16 %v1289, %v1285
    %v1434 = vpack.c.b16 %v1290, %v1286
    %v1435 = vpack.c.b16 %v1295, %v1291
    %v1436 = vpack.c.b16 %v1296, %v1292
    %v1437 = vpack.c.b16 %v1297, %v1293
    %v1438 = vpack.c.b16 %v1298, %v1294
    %v1439 = vpack.c.b16 %v1303, %v1299
    %v1440 = vpack.c.b16 %v1304, %v1300
    %v1441 = vpack.c.b16 %v1305, %v1301
    %v1442 = vpack.c.b16 %v1306, %v1302
    %v1443 = vpack.c.b16 %v1311, %v1307
    %v1444 = vpack.c.b16 %v1312, %v1308
    %v1445 = vpack.c.b16 %v1313, %v1309
    %v1446 = vpack.c.b16 %v1314, %v1310
    %v1447 = vpack.c.b16 %v1319, %v1315
    %v1448 = vpack.c.b16 %v1320, %v1316
    %v1449 = vpack.c.b16 %v1321, %v1317
    %v1450 = vpack.c.b16 %v1322, %v1318
    %1579 = vmatprep.subr.bf16.mxu0 %v1324
    %1580 = vmatpush1.bf16.msra.mxu0 %v1323
    %1581 = vmatprep.subr.bf16.mxu0 %v1328
    %1582 = vmatpush1.bf16.msra.mxu0 %v1327
    %1583 = vmatprep.subr.bf16.mxu0 %v1332
    %1584 = vmatpush1.bf16.msra.mxu0 %v1331
    %1585 = vmatprep.subr.bf16.mxu0 %v1336
    %1586 = vmatpush1.bf16.msra.mxu0 %v1335
    %1587 = vmatprep.subr.bf16.mxu0 %v1340
    %1588 = vmatpush1.bf16.msra.mxu0 %v1339
    %1589 = vmatprep.subr.bf16.mxu0 %v1344
    %1590 = vmatpush1.bf16.msra.mxu0 %v1343
    %1591 = vmatprep.subr.bf16.mxu0 %v1348
    %1592 = vmatpush1.bf16.msra.mxu0 %v1347
    %1593 = vmatprep.subr.bf16.mxu0 %v1352
    %1594 = vmatpush1.bf16.msra.mxu0 %v1351
    %1595 = vmatprep.subr.bf16.mxu0 %v1356
    %1596 = vmatpush1.bf16.msra.mxu0 %v1355
    %1597 = vmatprep.subr.bf16.mxu0 %v1360
    %1598 = vmatpush1.bf16.msra.mxu0 %v1359
    %1599 = vmatprep.subr.bf16.mxu0 %v1364
    %1600 = vmatpush1.bf16.msra.mxu0 %v1363
    %1601 = vmatprep.subr.bf16.mxu0 %v1368
    %1602 = vmatpush1.bf16.msra.mxu0 %v1367
    %1603 = vmatprep.subr.bf16.mxu0 %v1372
    %1604 = vmatpush1.bf16.msra.mxu0 %v1371
    %1605 = vmatprep.subr.bf16.mxu0 %v1376
    %1606 = vmatpush1.bf16.msra.mxu0 %v1375
    %1607 = vmatprep.subr.bf16.mxu0 %v1380
    %1608 = vmatpush1.bf16.msra.mxu0 %v1379
    %1609 = vmatprep.subr.bf16.mxu0 %v1384
    %1610 = vmatpush1.bf16.msra.mxu0 %v1383
    %1611 = vmatprep.mubr.bf16.mxu0 %v786
    %1612 = vmatmul.mubr.bf16.gmra.mrb[0].mxu0 %v785
    %v1613 = vpop.f32.mrb[0].mxu0
    %v1614 = vadd.f32 %v922, %v1613
    %v1615 = vpop.f32.mrb[0].mxu0
    %v1616 = vadd.f32 %v926, %v1615
    %v1617 = vpop.f32.mrb[0].mxu0
    %v1618 = vpop.f32.mrb[0].mxu0
    %1619 = vdwg.mxu0
    %1620 = vmatprep.subr.bf16.mxu0 %v1388
    %1621 = vmatpush1.bf16.msra.mxu0 %v1387
    %1622 = vmatprep.subr.bf16.mxu0 %v1392
    %1623 = vmatpush1.bf16.msra.mxu0 %v1391
    %1624 = vmatprep.subr.bf16.mxu0 %v1396
    %1625 = vmatpush1.bf16.msra.mxu0 %v1395
    %1626 = vmatprep.subr.bf16.mxu0 %v1400
    %1627 = vmatpush1.bf16.msra.mxu0 %v1399
    %1628 = vmatprep.subr.bf16.mxu0 %v1404
    %1629 = vmatpush1.bf16.msra.mxu0 %v1403
    %1630 = vmatprep.subr.bf16.mxu0 %v1408
    %1631 = vmatpush1.bf16.msra.mxu0 %v1407
    %1632 = vmatprep.subr.bf16.mxu0 %v1412
    %1633 = vmatpush1.bf16.msra.mxu0 %v1411
    %1634 = vmatprep.subr.bf16.mxu0 %v1416
    %1635 = vmatpush1.bf16.msra.mxu0 %v1415
    %1636 = vmatprep.subr.bf16.mxu0 %v1420
    %1637 = vmatpush1.bf16.msra.mxu0 %v1419
    %1638 = vmatprep.subr.bf16.mxu0 %v1424
    %1639 = vmatpush1.bf16.msra.mxu0 %v1423
    %1640 = vmatprep.subr.bf16.mxu0 %v1428
    %1641 = vmatpush1.bf16.msra.mxu0 %v1427
    %1642 = vmatprep.subr.bf16.mxu0 %v1432
    %1643 = vmatpush1.bf16.msra.mxu0 %v1431
    %1644 = vmatprep.subr.bf16.mxu0 %v1436
    %1645 = vmatpush1.bf16.msra.mxu0 %v1435
    %1646 = vmatprep.subr.bf16.mxu0 %v1440
    %1647 = vmatpush1.bf16.msra.mxu0 %v1439
    %1648 = vmatprep.subr.bf16.mxu0 %v1444
    %1649 = vmatpush1.bf16.msra.mxu0 %v1443
    %1650 = vmatprep.subr.bf16.mxu0 %v1448
    %1651 = vmatpush1.bf16.msra.mxu0 %v1447
    %1652 = vmatprep.mubr.bf16.mxu0 %v788
    %1653 = vmatmul.mubr.bf16.gmra.mrb[0].mxu0 %v787
    %v1654 = vpop.f32.mrb[0].mxu0
    %v1655 = vadd.f32 %v1614, %v1654
    %v1656 = vpop.f32.mrb[0].mxu0
    %v1657 = vadd.f32 %v1616, %v1656
    %v1658 = vpop.f32.mrb[0].mxu0
    %v1659 = vpop.f32.mrb[0].mxu0
    %1660 = vdwg.mxu0
    %1661 = vmatprep.subr.bf16.mxu0 %v1326
    %1662 = vmatpush1.bf16.msra.mxu0 %v1325
    %1663 = vmatprep.subr.bf16.mxu0 %v1330
    %1664 = vmatpush1.bf16.msra.mxu0 %v1329
    %1665 = vmatprep.subr.bf16.mxu0 %v1334
    %1666 = vmatpush1.bf16.msra.mxu0 %v1333
    %1667 = vmatprep.subr.bf16.mxu0 %v1338
    %1668 = vmatpush1.bf16.msra.mxu0 %v1337
    %1669 = vmatprep.subr.bf16.mxu0 %v1342
    %1670 = vmatpush1.bf16.msra.mxu0 %v1341
    %1671 = vmatprep.subr.bf16.mxu0 %v1346
    %1672 = vmatpush1.bf16.msra.mxu0 %v1345
    %1673 = vmatprep.subr.bf16.mxu0 %v1350
    %1674 = vmatpush1.bf16.msra.mxu0 %v1349
    %1675 = vmatprep.subr.bf16.mxu0 %v1354
    %1676 = vmatpush1.bf16.msra.mxu0 %v1353
    %1677 = vmatprep.subr.bf16.mxu0 %v1358
    %1678 = vmatpush1.bf16.msra.mxu0 %v1357
    %1679 = vmatprep.subr.bf16.mxu0 %v1362
    %1680 = vmatpush1.bf16.msra.mxu0 %v1361
    %1681 = vmatprep.subr.bf16.mxu0 %v1366
    %1682 = vmatpush1.bf16.msra.mxu0 %v1365
    %1683 = vmatprep.subr.bf16.mxu0 %v1370
    %1684 = vmatpush1.bf16.msra.mxu0 %v1369
    %1685 = vmatprep.subr.bf16.mxu0 %v1374
    %1686 = vmatpush1.bf16.msra.mxu0 %v1373
    %1687 = vmatprep.subr.bf16.mxu0 %v1378
    %1688 = vmatpush1.bf16.msra.mxu0 %v1377
    %1689 = vmatprep.subr.bf16.mxu0 %v1382
    %1690 = vmatpush1.bf16.msra.mxu0 %v1381
    %1691 = vmatprep.subr.bf16.mxu0 %v1386
    %1692 = vmatpush1.bf16.msra.mxu0 %v1385
    %1693 = vmatprep.mubr.bf16.mxu0 %v786
    %1694 = vmatmul.mubr.bf16.gmra.mrb[0].mxu0 %v785
    %v1695 = vpop.f32.mrb[0].mxu0
    %v1696 = vadd.f32 %v930, %v1695
    %v1697 = vpop.f32.mrb[0].mxu0
    %v1698 = vadd.f32 %v934, %v1697
    %v1699 = vpop.f32.mrb[0].mxu0
    %v1700 = vpop.f32.mrb[0].mxu0
    %1701 = vdwg.mxu0
    %1702 = vmatprep.subr.bf16.mxu0 %v1390
    %1703 = vmatpush1.bf16.msra.mxu0 %v1389
    %1704 = vmatprep.subr.bf16.mxu0 %v1394
    %1705 = vmatpush1.bf16.msra.mxu0 %v1393
    %1706 = vmatprep.subr.bf16.mxu0 %v1398
    %1707 = vmatpush1.bf16.msra.mxu0 %v1397
    %1708 = vmatprep.subr.bf16.mxu0 %v1402
    %1709 = vmatpush1.bf16.msra.mxu0 %v1401
    %1710 = vmatprep.subr.bf16.mxu0 %v1406
    %1711 = vmatpush1.bf16.msra.mxu0 %v1405
    %1712 = vmatprep.subr.bf16.mxu0 %v1410
    %1713 = vmatpush1.bf16.msra.mxu0 %v1409
    %1714 = vmatprep.subr.bf16.mxu0 %v1414
    %1715 = vmatpush1.bf16.msra.mxu0 %v1413
    %1716 = vmatprep.subr.bf16.mxu0 %v1418
    %1717 = vmatpush1.bf16.msra.mxu0 %v1417
    %1718 = vmatprep.subr.bf16.mxu0 %v1422
    %1719 = vmatpush1.bf16.msra.mxu0 %v1421
    %1720 = vmatprep.subr.bf16.mxu0 %v1426
    %1721 = vmatpush1.bf16.msra.mxu0 %v1425
    %1722 = vmatprep.subr.bf16.mxu0 %v1430
    %1723 = vmatpush1.bf16.msra.mxu0 %v1429
    %1724 = vmatprep.subr.bf16.mxu0 %v1434
    %1725 = vmatpush1.bf16.msra.mxu0 %v1433
    %1726 = vmatprep.subr.bf16.mxu0 %v1438
    %1727 = vmatpush1.bf16.msra.mxu0 %v1437
    %1728 = vmatprep.subr.bf16.mxu0 %v1442
    %1729 = vmatpush1.bf16.msra.mxu0 %v1441
    %1730 = vmatprep.subr.bf16.mxu0 %v1446
    %1731 = vmatpush1.bf16.msra.mxu0 %v1445
    %1732 = vmatprep.subr.bf16.mxu0 %v1450
    %1733 = vmatpush1.bf16.msra.mxu0 %v1449
    %1734 = vmatprep.mubr.bf16.mxu0 %v788
    %1735 = vmatmul.mubr.bf16.gmra.mrb[0].mxu0 %v787
    %v1736 = vpop.f32.mrb[0].mxu0
    %v1737 = vadd.f32 %v1696, %v1736
    %v1738 = vpop.f32.mrb[0].mxu0
    %v1739 = vadd.f32 %v1698, %v1738
    %v1740 = vpop.f32.mrb[0].mxu0
    %v1741 = vpop.f32.mrb[0].mxu0
    %1742 = vdwg.mxu0
    %v1743 = vtanh.pop %v1655
    %v1744 = vtanh.pop %v1657
    %v1745 = vtanh.pop %v1737
    %v1746 = vtanh.pop %v1739
    %v1747 = vpack.c.bf16 %v1743, %v1743
    %v1748 = vpack.c.bf16 %v1744, %v1744
    %v1749 = vpack.c.bf16 %v1745, %v1745
    %v1750 = vpack.c.bf16 %v1746, %v1746
    %v1751 = vld [vmem:[#allocation10] sm:$0xff]
    %v1752 = vld [vmem:[#allocation10 + $0x8] sm:$0xff]
    %v1753 = vld [vmem:[#allocation10 + $0x10] sm:$0xff]
    %v1754 = vld [vmem:[#allocation10 + $0x18] sm:$0xff]
    %v1755 = vld [vmem:[#allocation10 + $0x20] sm:$0xff]
    %v1756 = vld [vmem:[#allocation10 + $0x28] sm:$0xff]
    %v1757 = vld [vmem:[#allocation10 + $0x30] sm:$0xff]
    %v1758 = vld [vmem:[#allocation10 + $0x38] sm:$0xff]
    %v1759 = vld [vmem:[#allocation10 + $0x40] sm:$0xff]
    %v1760 = vld [vmem:[#allocation10 + $0x48] sm:$0xff]
    %v1761 = vld [vmem:[#allocation10 + $0x50] sm:$0xff]
    %v1762 = vld [vmem:[#allocation10 + $0x58] sm:$0xff]
    %v1763 = vld [vmem:[#allocation10 + $0x60] sm:$0xff]
    %v1764 = vld [vmem:[#allocation10 + $0x68] sm:$0xff]
    %v1765 = vld [vmem:[#allocation10 + $0x70] sm:$0xff]
    %v1766 = vld [vmem:[#allocation10 + $0x78] sm:$0xff]
    %v1767 = vld [vmem:[#allocation10 + $0x80] sm:$0xff]
    %v1768 = vld [vmem:[#allocation10 + $0x88] sm:$0xff]
    %v1769 = vld [vmem:[#allocation10 + $0x90] sm:$0xff]
    %v1770 = vld [vmem:[#allocation10 + $0x98] sm:$0xff]
    %v1771 = vld [vmem:[#allocation10 + $0xa0] sm:$0xff]
    %v1772 = vld [vmem:[#allocation10 + $0xa8] sm:$0xff]
    %v1773 = vld [vmem:[#allocation10 + $0xb0] sm:$0xff]
    %v1774 = vld [vmem:[#allocation10 + $0xb8] sm:$0xff]
    %v1775 = vld [vmem:[#allocation10 + $0xc0] sm:$0xff]
    %v1776 = vld [vmem:[#allocation10 + $0xc8] sm:$0xff]
    %v1777 = vld [vmem:[#allocation10 + $0xd0] sm:$0xff]
    %v1778 = vld [vmem:[#allocation10 + $0xd8] sm:$0xff]
    %v1779 = vld [vmem:[#allocation10 + $0xe0] sm:$0xff]
    %v1780 = vld [vmem:[#allocation10 + $0xe8] sm:$0xff]
    %v1781 = vld [vmem:[#allocation10 + $0xf0] sm:$0xff]
    %v1782 = vld [vmem:[#allocation10 + $0xf8] sm:$0xff]
    %v1783 = vld [vmem:[#allocation10 + $0x100] sm:$0xff]
    %v1784 = vld [vmem:[#allocation10 + $0x108] sm:$0xff]
    %v1785 = vld [vmem:[#allocation10 + $0x110] sm:$0xff]
    %v1786 = vld [vmem:[#allocation10 + $0x118] sm:$0xff]
    %v1787 = vld [vmem:[#allocation10 + $0x120] sm:$0xff]
    %v1788 = vld [vmem:[#allocation10 + $0x128] sm:$0xff]
    %v1789 = vld [vmem:[#allocation10 + $0x130] sm:$0xff]
    %v1790 = vld [vmem:[#allocation10 + $0x138] sm:$0xff]
    %v1791 = vld [vmem:[#allocation10 + $0x140] sm:$0xff]
    %v1792 = vld [vmem:[#allocation10 + $0x148] sm:$0xff]
    %v1793 = vld [vmem:[#allocation10 + $0x150] sm:$0xff]
    %v1794 = vld [vmem:[#allocation10 + $0x158] sm:$0xff]
    %v1795 = vld [vmem:[#allocation10 + $0x160] sm:$0xff]
    %v1796 = vld [vmem:[#allocation10 + $0x168] sm:$0xff]
    %v1797 = vld [vmem:[#allocation10 + $0x170] sm:$0xff]
    %v1798 = vld [vmem:[#allocation10 + $0x178] sm:$0xff]
    %v1799 = vld [vmem:[#allocation10 + $0x180] sm:$0xff]
    %v1800 = vld [vmem:[#allocation10 + $0x188] sm:$0xff]
    %v1801 = vld [vmem:[#allocation10 + $0x190] sm:$0xff]
    %v1802 = vld [vmem:[#allocation10 + $0x198] sm:$0xff]
    %v1803 = vld [vmem:[#allocation10 + $0x1a0] sm:$0xff]
    %v1804 = vld [vmem:[#allocation10 + $0x1a8] sm:$0xff]
    %v1805 = vld [vmem:[#allocation10 + $0x1b0] sm:$0xff]
    %v1806 = vld [vmem:[#allocation10 + $0x1b8] sm:$0xff]
    %v1807 = vld [vmem:[#allocation10 + $0x1c0] sm:$0xff]
    %v1808 = vld [vmem:[#allocation10 + $0x1c8] sm:$0xff]
    %v1809 = vld [vmem:[#allocation10 + $0x1d0] sm:$0xff]
    %v1810 = vld [vmem:[#allocation10 + $0x1d8] sm:$0xff]
    %v1811 = vld [vmem:[#allocation10 + $0x1e0] sm:$0xff]
    %v1812 = vld [vmem:[#allocation10 + $0x1e8] sm:$0xff]
    %v1813 = vld [vmem:[#allocation10 + $0x1f0] sm:$0xff]
    %v1814 = vld [vmem:[#allocation10 + $0x1f8] sm:$0xff]
    %v1815 = vld [vmem:[#allocation10 + $0x200] sm:$0xff]
    %v1816 = vld [vmem:[#allocation10 + $0x208] sm:$0xff]
    %v1817 = vld [vmem:[#allocation10 + $0x210] sm:$0xff]
    %v1818 = vld [vmem:[#allocation10 + $0x218] sm:$0xff]
    %v1819 = vld [vmem:[#allocation10 + $0x220] sm:$0xff]
    %v1820 = vld [vmem:[#allocation10 + $0x228] sm:$0xff]
    %v1821 = vld [vmem:[#allocation10 + $0x230] sm:$0xff]
    %v1822 = vld [vmem:[#allocation10 + $0x238] sm:$0xff]
    %v1823 = vld [vmem:[#allocation10 + $0x240] sm:$0xff]
    %v1824 = vld [vmem:[#allocation10 + $0x248] sm:$0xff]
    %v1825 = vld [vmem:[#allocation10 + $0x250] sm:$0xff]
    %v1826 = vld [vmem:[#allocation10 + $0x258] sm:$0xff]
    %v1827 = vld [vmem:[#allocation10 + $0x260] sm:$0xff]
    %v1828 = vld [vmem:[#allocation10 + $0x268] sm:$0xff]
    %v1829 = vld [vmem:[#allocation10 + $0x270] sm:$0xff]
    %v1830 = vld [vmem:[#allocation10 + $0x278] sm:$0xff]
    %v1831 = vld [vmem:[#allocation10 + $0x280] sm:$0xff]
    %v1832 = vld [vmem:[#allocation10 + $0x288] sm:$0xff]
    %v1833 = vld [vmem:[#allocation10 + $0x290] sm:$0xff]
    %v1834 = vld [vmem:[#allocation10 + $0x298] sm:$0xff]
    %v1835 = vld [vmem:[#allocation10 + $0x2a0] sm:$0xff]
    %v1836 = vld [vmem:[#allocation10 + $0x2a8] sm:$0xff]
    %v1837 = vld [vmem:[#allocation10 + $0x2b0] sm:$0xff]
    %v1838 = vld [vmem:[#allocation10 + $0x2b8] sm:$0xff]
    %v1839 = vld [vmem:[#allocation10 + $0x2c0] sm:$0xff]
    %v1840 = vld [vmem:[#allocation10 + $0x2c8] sm:$0xff]
    %v1841 = vld [vmem:[#allocation10 + $0x2d0] sm:$0xff]
    %v1842 = vld [vmem:[#allocation10 + $0x2d8] sm:$0xff]
    %v1843 = vld [vmem:[#allocation10 + $0x2e0] sm:$0xff]
    %v1844 = vld [vmem:[#allocation10 + $0x2e8] sm:$0xff]
    %v1845 = vld [vmem:[#allocation10 + $0x2f0] sm:$0xff]
    %v1846 = vld [vmem:[#allocation10 + $0x2f8] sm:$0xff]
    %v1847 = vld [vmem:[#allocation10 + $0x300] sm:$0xff]
    %v1848 = vld [vmem:[#allocation10 + $0x308] sm:$0xff]
    %v1849 = vld [vmem:[#allocation10 + $0x310] sm:$0xff]
    %v1850 = vld [vmem:[#allocation10 + $0x318] sm:$0xff]
    %v1851 = vld [vmem:[#allocation10 + $0x320] sm:$0xff]
    %v1852 = vld [vmem:[#allocation10 + $0x328] sm:$0xff]
    %v1853 = vld [vmem:[#allocation10 + $0x330] sm:$0xff]
    %v1854 = vld [vmem:[#allocation10 + $0x338] sm:$0xff]
    %v1855 = vld [vmem:[#allocation10 + $0x340] sm:$0xff]
    %v1856 = vld [vmem:[#allocation10 + $0x348] sm:$0xff]
    %v1857 = vld [vmem:[#allocation10 + $0x350] sm:$0xff]
    %v1858 = vld [vmem:[#allocation10 + $0x358] sm:$0xff]
    %v1859 = vld [vmem:[#allocation10 + $0x360] sm:$0xff]
    %v1860 = vld [vmem:[#allocation10 + $0x368] sm:$0xff]
    %v1861 = vld [vmem:[#allocation10 + $0x370] sm:$0xff]
    %v1862 = vld [vmem:[#allocation10 + $0x378] sm:$0xff]
    %v1863 = vld [vmem:[#allocation10 + $0x380] sm:$0xff]
    %v1864 = vld [vmem:[#allocation10 + $0x388] sm:$0xff]
    %v1865 = vld [vmem:[#allocation10 + $0x390] sm:$0xff]
    %v1866 = vld [vmem:[#allocation10 + $0x398] sm:$0xff]
    %v1867 = vld [vmem:[#allocation10 + $0x3a0] sm:$0xff]
    %v1868 = vld [vmem:[#allocation10 + $0x3a8] sm:$0xff]
    %v1869 = vld [vmem:[#allocation10 + $0x3b0] sm:$0xff]
    %v1870 = vld [vmem:[#allocation10 + $0x3b8] sm:$0xff]
    %v1871 = vld [vmem:[#allocation10 + $0x3c0] sm:$0xff]
    %v1872 = vld [vmem:[#allocation10 + $0x3c8] sm:$0xff]
    %v1873 = vld [vmem:[#allocation10 + $0x3d0] sm:$0xff]
    %v1874 = vld [vmem:[#allocation10 + $0x3d8] sm:$0xff]
    %v1875 = vld [vmem:[#allocation10 + $0x3e0] sm:$0xff]
    %v1876 = vld [vmem:[#allocation10 + $0x3e8] sm:$0xff]
    %v1877 = vld [vmem:[#allocation10 + $0x3f0] sm:$0xff]
    %v1878 = vld [vmem:[#allocation10 + $0x3f8] sm:$0xff]
    %v1879 = vld [vmem:[%s8] sm:$0xf]
    %v1881 = vlaneseq
    %v1882 = vshrl.u32 %v1881, 7
    %v1883 = vsub.s32 0, %v1882
    %v1884 = vrot.slane %v1879, %v1883
    %v1885 = vlaneseq
    %v1886 = vshrl.u32 %v1885, 7
    %v1887 = vsub.s32 1, %v1886
    %v1888 = vrot.slane %v1879, %v1887
    %v1889 = vlaneseq
    %v1890 = vshrl.u32 %v1889, 7
    %v1891 = vsub.s32 2, %v1890
    %v1892 = vrot.slane %v1879, %v1891
    %v1893 = vlaneseq
    %v1894 = vshrl.u32 %v1893, 7
    %v1895 = vsub.s32 3, %v1894
    %v1896 = vrot.slane %v1879, %v1895
    %v2029 = vunpack.c.l.b16 %v1751
    %v2030 = vunpack.c.h.b16 %v1751
    %v2031 = vunpack.c.l.b16 %v1752
    %v2032 = vunpack.c.h.b16 %v1752
    %v2033 = vunpack.c.l.b16 %v1753
    %v2034 = vunpack.c.h.b16 %v1753
    %v2035 = vunpack.c.l.b16 %v1754
    %v2036 = vunpack.c.h.b16 %v1754
    %v2037 = vunpack.c.l.b16 %v1755
    %v2038 = vunpack.c.h.b16 %v1755
    %v2039 = vunpack.c.l.b16 %v1756
    %v2040 = vunpack.c.h.b16 %v1756
    %v2041 = vunpack.c.l.b16 %v1757
    %v2042 = vunpack.c.h.b16 %v1757
    %v2043 = vunpack.c.l.b16 %v1758
    %v2044 = vunpack.c.h.b16 %v1758
    %v2045 = vunpack.c.l.b16 %v1759
    %v2046 = vunpack.c.h.b16 %v1759
    %v2047 = vunpack.c.l.b16 %v1760
    %v2048 = vunpack.c.h.b16 %v1760
    %v2049 = vunpack.c.l.b16 %v1761
    %v2050 = vunpack.c.h.b16 %v1761
    %v2051 = vunpack.c.l.b16 %v1762
    %v2052 = vunpack.c.h.b16 %v1762
    %v2053 = vunpack.c.l.b16 %v1763
    %v2054 = vunpack.c.h.b16 %v1763
    %v2055 = vunpack.c.l.b16 %v1764
    %v2056 = vunpack.c.h.b16 %v1764
    %v2057 = vunpack.c.l.b16 %v1765
    %v2058 = vunpack.c.h.b16 %v1765
    %v2059 = vunpack.c.l.b16 %v1766
    %v2060 = vunpack.c.h.b16 %v1766
    %v2061 = vunpack.c.l.b16 %v1767
    %v2062 = vunpack.c.h.b16 %v1767
    %v2063 = vunpack.c.l.b16 %v1768
    %v2064 = vunpack.c.h.b16 %v1768
    %v2065 = vunpack.c.l.b16 %v1769
    %v2066 = vunpack.c.h.b16 %v1769
    %v2067 = vunpack.c.l.b16 %v1770
    %v2068 = vunpack.c.h.b16 %v1770
    %v2069 = vunpack.c.l.b16 %v1771
    %v2070 = vunpack.c.h.b16 %v1771
    %v2071 = vunpack.c.l.b16 %v1772
    %v2072 = vunpack.c.h.b16 %v1772
    %v2073 = vunpack.c.l.b16 %v1773
    %v2074 = vunpack.c.h.b16 %v1773
    %v2075 = vunpack.c.l.b16 %v1774
    %v2076 = vunpack.c.h.b16 %v1774
    %v2077 = vunpack.c.l.b16 %v1775
    %v2078 = vunpack.c.h.b16 %v1775
    %v2079 = vunpack.c.l.b16 %v1776
    %v2080 = vunpack.c.h.b16 %v1776
    %v2081 = vunpack.c.l.b16 %v1777
    %v2082 = vunpack.c.h.b16 %v1777
    %v2083 = vunpack.c.l.b16 %v1778
    %v2084 = vunpack.c.h.b16 %v1778
    %v2085 = vunpack.c.l.b16 %v1779
    %v2086 = vunpack.c.h.b16 %v1779
    %v2087 = vunpack.c.l.b16 %v1780
    %v2088 = vunpack.c.h.b16 %v1780
    %v2089 = vunpack.c.l.b16 %v1781
    %v2090 = vunpack.c.h.b16 %v1781
    %v2091 = vunpack.c.l.b16 %v1782
    %v2092 = vunpack.c.h.b16 %v1782
    %v2093 = vunpack.c.l.b16 %v1783
    %v2094 = vunpack.c.h.b16 %v1783
    %v2095 = vunpack.c.l.b16 %v1784
    %v2096 = vunpack.c.h.b16 %v1784
    %v2097 = vunpack.c.l.b16 %v1785
    %v2098 = vunpack.c.h.b16 %v1785
    %v2099 = vunpack.c.l.b16 %v1786
    %v2100 = vunpack.c.h.b16 %v1786
    %v2101 = vunpack.c.l.b16 %v1787
    %v2102 = vunpack.c.h.b16 %v1787
    %v2103 = vunpack.c.l.b16 %v1788
    %v2104 = vunpack.c.h.b16 %v1788
    %v2105 = vunpack.c.l.b16 %v1789
    %v2106 = vunpack.c.h.b16 %v1789
    %v2107 = vunpack.c.l.b16 %v1790
    %v2108 = vunpack.c.h.b16 %v1790
    %v2109 = vunpack.c.l.b16 %v1791
    %v2110 = vunpack.c.h.b16 %v1791
    %v2111 = vunpack.c.l.b16 %v1792
    %v2112 = vunpack.c.h.b16 %v1792
    %v2113 = vunpack.c.l.b16 %v1793
    %v2114 = vunpack.c.h.b16 %v1793
    %v2115 = vunpack.c.l.b16 %v1794
    %v2116 = vunpack.c.h.b16 %v1794
    %v2117 = vunpack.c.l.b16 %v1795
    %v2118 = vunpack.c.h.b16 %v1795
    %v2119 = vunpack.c.l.b16 %v1796
    %v2120 = vunpack.c.h.b16 %v1796
    %v2121 = vunpack.c.l.b16 %v1797
    %v2122 = vunpack.c.h.b16 %v1797
    %v2123 = vunpack.c.l.b16 %v1798
    %v2124 = vunpack.c.h.b16 %v1798
    %v2125 = vunpack.c.l.b16 %v1799
    %v2126 = vunpack.c.h.b16 %v1799
    %v2127 = vunpack.c.l.b16 %v1800
    %v2128 = vunpack.c.h.b16 %v1800
    %v2129 = vunpack.c.l.b16 %v1801
    %v2130 = vunpack.c.h.b16 %v1801
    %v2131 = vunpack.c.l.b16 %v1802
    %v2132 = vunpack.c.h.b16 %v1802
    %v2133 = vunpack.c.l.b16 %v1803
    %v2134 = vunpack.c.h.b16 %v1803
    %v2135 = vunpack.c.l.b16 %v1804
    %v2136 = vunpack.c.h.b16 %v1804
    %v2137 = vunpack.c.l.b16 %v1805
    %v2138 = vunpack.c.h.b16 %v1805
    %v2139 = vunpack.c.l.b16 %v1806
    %v2140 = vunpack.c.h.b16 %v1806
    %v2141 = vunpack.c.l.b16 %v1807
    %v2142 = vunpack.c.h.b16 %v1807
    %v2143 = vunpack.c.l.b16 %v1808
    %v2144 = vunpack.c.h.b16 %v1808
    %v2145 = vunpack.c.l.b16 %v1809
    %v2146 = vunpack.c.h.b16 %v1809
    %v2147 = vunpack.c.l.b16 %v1810
    %v2148 = vunpack.c.h.b16 %v1810
    %v2149 = vunpack.c.l.b16 %v1811
    %v2150 = vunpack.c.h.b16 %v1811
    %v2151 = vunpack.c.l.b16 %v1812
    %v2152 = vunpack.c.h.b16 %v1812
    %v2153 = vunpack.c.l.b16 %v1813
    %v2154 = vunpack.c.h.b16 %v1813
    %v2155 = vunpack.c.l.b16 %v1814
    %v2156 = vunpack.c.h.b16 %v1814
    %v2157 = vunpack.c.l.b16 %v1815
    %v2158 = vunpack.c.h.b16 %v1815
    %v2159 = vunpack.c.l.b16 %v1816
    %v2160 = vunpack.c.h.b16 %v1816
    %v2161 = vunpack.c.l.b16 %v1817
    %v2162 = vunpack.c.h.b16 %v1817
    %v2163 = vunpack.c.l.b16 %v1818
    %v2164 = vunpack.c.h.b16 %v1818
    %v2165 = vunpack.c.l.b16 %v1819
    %v2166 = vunpack.c.h.b16 %v1819
    %v2167 = vunpack.c.l.b16 %v1820
    %v2168 = vunpack.c.h.b16 %v1820
    %v2169 = vunpack.c.l.b16 %v1821
    %v2170 = vunpack.c.h.b16 %v1821
    %v2171 = vunpack.c.l.b16 %v1822
    %v2172 = vunpack.c.h.b16 %v1822
    %v2173 = vunpack.c.l.b16 %v1823
    %v2174 = vunpack.c.h.b16 %v1823
    %v2175 = vunpack.c.l.b16 %v1824
    %v2176 = vunpack.c.h.b16 %v1824
    %v2177 = vunpack.c.l.b16 %v1825
    %v2178 = vunpack.c.h.b16 %v1825
    %v2179 = vunpack.c.l.b16 %v1826
    %v2180 = vunpack.c.h.b16 %v1826
    %v2181 = vunpack.c.l.b16 %v1827
    %v2182 = vunpack.c.h.b16 %v1827
    %v2183 = vunpack.c.l.b16 %v1828
    %v2184 = vunpack.c.h.b16 %v1828
    %v2185 = vunpack.c.l.b16 %v1829
    %v2186 = vunpack.c.h.b16 %v1829
    %v2187 = vunpack.c.l.b16 %v1830
    %v2188 = vunpack.c.h.b16 %v1830
    %v2189 = vunpack.c.l.b16 %v1831
    %v2190 = vunpack.c.h.b16 %v1831
    %v2191 = vunpack.c.l.b16 %v1832
    %v2192 = vunpack.c.h.b16 %v1832
    %v2193 = vunpack.c.l.b16 %v1833
    %v2194 = vunpack.c.h.b16 %v1833
    %v2195 = vunpack.c.l.b16 %v1834
    %v2196 = vunpack.c.h.b16 %v1834
    %v2197 = vunpack.c.l.b16 %v1835
    %v2198 = vunpack.c.h.b16 %v1835
    %v2199 = vunpack.c.l.b16 %v1836
    %v2200 = vunpack.c.h.b16 %v1836
    %v2201 = vunpack.c.l.b16 %v1837
    %v2202 = vunpack.c.h.b16 %v1837
    %v2203 = vunpack.c.l.b16 %v1838
    %v2204 = vunpack.c.h.b16 %v1838
    %v2205 = vunpack.c.l.b16 %v1839
    %v2206 = vunpack.c.h.b16 %v1839
    %v2207 = vunpack.c.l.b16 %v1840
    %v2208 = vunpack.c.h.b16 %v1840
    %v2209 = vunpack.c.l.b16 %v1841
    %v2210 = vunpack.c.h.b16 %v1841
    %v2211 = vunpack.c.l.b16 %v1842
    %v2212 = vunpack.c.h.b16 %v1842
    %v2213 = vunpack.c.l.b16 %v1843
    %v2214 = vunpack.c.h.b16 %v1843
    %v2215 = vunpack.c.l.b16 %v1844
    %v2216 = vunpack.c.h.b16 %v1844
    %v2217 = vunpack.c.l.b16 %v1845
    %v2218 = vunpack.c.h.b16 %v1845
    %v2219 = vunpack.c.l.b16 %v1846
    %v2220 = vunpack.c.h.b16 %v1846
    %v2221 = vunpack.c.l.b16 %v1847
    %v2222 = vunpack.c.h.b16 %v1847
    %v2223 = vunpack.c.l.b16 %v1848
    %v2224 = vunpack.c.h.b16 %v1848
    %v2225 = vunpack.c.l.b16 %v1849
    %v2226 = vunpack.c.h.b16 %v1849
    %v2227 = vunpack.c.l.b16 %v1850
    %v2228 = vunpack.c.h.b16 %v1850
    %v2229 = vunpack.c.l.b16 %v1851
    %v2230 = vunpack.c.h.b16 %v1851
    %v2231 = vunpack.c.l.b16 %v1852
    %v2232 = vunpack.c.h.b16 %v1852
    %v2233 = vunpack.c.l.b16 %v1853
    %v2234 = vunpack.c.h.b16 %v1853
    %v2235 = vunpack.c.l.b16 %v1854
    %v2236 = vunpack.c.h.b16 %v1854
    %v2237 = vunpack.c.l.b16 %v1855
    %v2238 = vunpack.c.h.b16 %v1855
    %v2239 = vunpack.c.l.b16 %v1856
    %v2240 = vunpack.c.h.b16 %v1856
    %v2241 = vunpack.c.l.b16 %v1857
    %v2242 = vunpack.c.h.b16 %v1857
    %v2243 = vunpack.c.l.b16 %v1858
    %v2244 = vunpack.c.h.b16 %v1858
    %v2245 = vunpack.c.l.b16 %v1859
    %v2246 = vunpack.c.h.b16 %v1859
    %v2247 = vunpack.c.l.b16 %v1860
    %v2248 = vunpack.c.h.b16 %v1860
    %v2249 = vunpack.c.l.b16 %v1861
    %v2250 = vunpack.c.h.b16 %v1861
    %v2251 = vunpack.c.l.b16 %v1862
    %v2252 = vunpack.c.h.b16 %v1862
    %v2253 = vunpack.c.l.b16 %v1863
    %v2254 = vunpack.c.h.b16 %v1863
    %v2255 = vunpack.c.l.b16 %v1864
    %v2256 = vunpack.c.h.b16 %v1864
    %v2257 = vunpack.c.l.b16 %v1865
    %v2258 = vunpack.c.h.b16 %v1865
    %v2259 = vunpack.c.l.b16 %v1866
    %v2260 = vunpack.c.h.b16 %v1866
    %v2261 = vunpack.c.l.b16 %v1867
    %v2262 = vunpack.c.h.b16 %v1867
    %v2263 = vunpack.c.l.b16 %v1868
    %v2264 = vunpack.c.h.b16 %v1868
    %v2265 = vunpack.c.l.b16 %v1869
    %v2266 = vunpack.c.h.b16 %v1869
    %v2267 = vunpack.c.l.b16 %v1870
    %v2268 = vunpack.c.h.b16 %v1870
    %v2269 = vunpack.c.l.b16 %v1871
    %v2270 = vunpack.c.h.b16 %v1871
    %v2271 = vunpack.c.l.b16 %v1872
    %v2272 = vunpack.c.h.b16 %v1872
    %v2273 = vunpack.c.l.b16 %v1873
    %v2274 = vunpack.c.h.b16 %v1873
    %v2275 = vunpack.c.l.b16 %v1874
    %v2276 = vunpack.c.h.b16 %v1874
    %v2277 = vunpack.c.l.b16 %v1875
    %v2278 = vunpack.c.h.b16 %v1875
    %v2279 = vunpack.c.l.b16 %v1876
    %v2280 = vunpack.c.h.b16 %v1876
    %v2281 = vunpack.c.l.b16 %v1877
    %v2282 = vunpack.c.h.b16 %v1877
    %v2283 = vunpack.c.l.b16 %v1878
    %v2284 = vunpack.c.h.b16 %v1878
    %v2285 = vpack.c.b16 %v2033, %v2029
    %v2286 = vpack.c.b16 %v2034, %v2030
    %v2287 = vpack.c.b16 %v2035, %v2031
    %v2288 = vpack.c.b16 %v2036, %v2032
    %v2289 = vpack.c.b16 %v2041, %v2037
    %v2290 = vpack.c.b16 %v2042, %v2038
    %v2291 = vpack.c.b16 %v2043, %v2039
    %v2292 = vpack.c.b16 %v2044, %v2040
    %v2293 = vpack.c.b16 %v2049, %v2045
    %v2294 = vpack.c.b16 %v2050, %v2046
    %v2295 = vpack.c.b16 %v2051, %v2047
    %v2296 = vpack.c.b16 %v2052, %v2048
    %v2297 = vpack.c.b16 %v2057, %v2053
    %v2298 = vpack.c.b16 %v2058, %v2054
    %v2299 = vpack.c.b16 %v2059, %v2055
    %v2300 = vpack.c.b16 %v2060, %v2056
    %v2301 = vpack.c.b16 %v2065, %v2061
    %v2302 = vpack.c.b16 %v2066, %v2062
    %v2303 = vpack.c.b16 %v2067, %v2063
    %v2304 = vpack.c.b16 %v2068, %v2064
    %v2305 = vpack.c.b16 %v2073, %v2069
    %v2306 = vpack.c.b16 %v2074, %v2070
    %v2307 = vpack.c.b16 %v2075, %v2071
    %v2308 = vpack.c.b16 %v2076, %v2072
    %v2309 = vpack.c.b16 %v2081, %v2077
    %v2310 = vpack.c.b16 %v2082, %v2078
    %v2311 = vpack.c.b16 %v2083, %v2079
    %v2312 = vpack.c.b16 %v2084, %v2080
    %v2313 = vpack.c.b16 %v2089, %v2085
    %v2314 = vpack.c.b16 %v2090, %v2086
    %v2315 = vpack.c.b16 %v2091, %v2087
    %v2316 = vpack.c.b16 %v2092, %v2088
    %v2317 = vpack.c.b16 %v2097, %v2093
    %v2318 = vpack.c.b16 %v2098, %v2094
    %v2319 = vpack.c.b16 %v2099, %v2095
    %v2320 = vpack.c.b16 %v2100, %v2096
    %v2321 = vpack.c.b16 %v2105, %v2101
    %v2322 = vpack.c.b16 %v2106, %v2102
    %v2323 = vpack.c.b16 %v2107, %v2103
    %v2324 = vpack.c.b16 %v2108, %v2104
    %v2325 = vpack.c.b16 %v2113, %v2109
    %v2326 = vpack.c.b16 %v2114, %v2110
    %v2327 = vpack.c.b16 %v2115, %v2111
    %v2328 = vpack.c.b16 %v2116, %v2112
    %v2329 = vpack.c.b16 %v2121, %v2117
    %v2330 = vpack.c.b16 %v2122, %v2118
    %v2331 = vpack.c.b16 %v2123, %v2119
    %v2332 = vpack.c.b16 %v2124, %v2120
    %v2333 = vpack.c.b16 %v2129, %v2125
    %v2334 = vpack.c.b16 %v2130, %v2126
    %v2335 = vpack.c.b16 %v2131, %v2127
    %v2336 = vpack.c.b16 %v2132, %v2128
    %v2337 = vpack.c.b16 %v2137, %v2133
    %v2338 = vpack.c.b16 %v2138, %v2134
    %v2339 = vpack.c.b16 %v2139, %v2135
    %v2340 = vpack.c.b16 %v2140, %v2136
    %v2341 = vpack.c.b16 %v2145, %v2141
    %v2342 = vpack.c.b16 %v2146, %v2142
    %v2343 = vpack.c.b16 %v2147, %v2143
    %v2344 = vpack.c.b16 %v2148, %v2144
    %v2345 = vpack.c.b16 %v2153, %v2149
    %v2346 = vpack.c.b16 %v2154, %v2150
    %v2347 = vpack.c.b16 %v2155, %v2151
    %v2348 = vpack.c.b16 %v2156, %v2152
    %v2349 = vpack.c.b16 %v2161, %v2157
    %v2350 = vpack.c.b16 %v2162, %v2158
    %v2351 = vpack.c.b16 %v2163, %v2159
    %v2352 = vpack.c.b16 %v2164, %v2160
    %v2353 = vpack.c.b16 %v2169, %v2165
    %v2354 = vpack.c.b16 %v2170, %v2166
    %v2355 = vpack.c.b16 %v2171, %v2167
    %v2356 = vpack.c.b16 %v2172, %v2168
    %v2357 = vpack.c.b16 %v2177, %v2173
    %v2358 = vpack.c.b16 %v2178, %v2174
    %v2359 = vpack.c.b16 %v2179, %v2175
    %v2360 = vpack.c.b16 %v2180, %v2176
    %v2361 = vpack.c.b16 %v2185, %v2181
    %v2362 = vpack.c.b16 %v2186, %v2182
    %v2363 = vpack.c.b16 %v2187, %v2183
    %v2364 = vpack.c.b16 %v2188, %v2184
    %v2365 = vpack.c.b16 %v2193, %v2189
    %v2366 = vpack.c.b16 %v2194, %v2190
    %v2367 = vpack.c.b16 %v2195, %v2191
    %v2368 = vpack.c.b16 %v2196, %v2192
    %v2369 = vpack.c.b16 %v2201, %v2197
    %v2370 = vpack.c.b16 %v2202, %v2198
    %v2371 = vpack.c.b16 %v2203, %v2199
    %v2372 = vpack.c.b16 %v2204, %v2200
    %v2373 = vpack.c.b16 %v2209, %v2205
    %v2374 = vpack.c.b16 %v2210, %v2206
    %v2375 = vpack.c.b16 %v2211, %v2207
    %v2376 = vpack.c.b16 %v2212, %v2208
    %v2377 = vpack.c.b16 %v2217, %v2213
    %v2378 = vpack.c.b16 %v2218, %v2214
    %v2379 = vpack.c.b16 %v2219, %v2215
    %v2380 = vpack.c.b16 %v2220, %v2216
    %v2381 = vpack.c.b16 %v2225, %v2221
    %v2382 = vpack.c.b16 %v2226, %v2222
    %v2383 = vpack.c.b16 %v2227, %v2223
    %v2384 = vpack.c.b16 %v2228, %v2224
    %v2385 = vpack.c.b16 %v2233, %v2229
    %v2386 = vpack.c.b16 %v2234, %v2230
    %v2387 = vpack.c.b16 %v2235, %v2231
    %v2388 = vpack.c.b16 %v2236, %v2232
    %v2389 = vpack.c.b16 %v2241, %v2237
    %v2390 = vpack.c.b16 %v2242, %v2238
    %v2391 = vpack.c.b16 %v2243, %v2239
    %v2392 = vpack.c.b16 %v2244, %v2240
    %v2393 = vpack.c.b16 %v2249, %v2245
    %v2394 = vpack.c.b16 %v2250, %v2246
    %v2395 = vpack.c.b16 %v2251, %v2247
    %v2396 = vpack.c.b16 %v2252, %v2248
    %v2397 = vpack.c.b16 %v2257, %v2253
    %v2398 = vpack.c.b16 %v2258, %v2254
    %v2399 = vpack.c.b16 %v2259, %v2255
    %v2400 = vpack.c.b16 %v2260, %v2256
    %v2401 = vpack.c.b16 %v2265, %v2261
    %v2402 = vpack.c.b16 %v2266, %v2262
    %v2403 = vpack.c.b16 %v2267, %v2263
    %v2404 = vpack.c.b16 %v2268, %v2264
    %v2405 = vpack.c.b16 %v2273, %v2269
    %v2406 = vpack.c.b16 %v2274, %v2270
    %v2407 = vpack.c.b16 %v2275, %v2271
    %v2408 = vpack.c.b16 %v2276, %v2272
    %v2409 = vpack.c.b16 %v2281, %v2277
    %v2410 = vpack.c.b16 %v2282, %v2278
    %v2411 = vpack.c.b16 %v2283, %v2279
    %v2412 = vpack.c.b16 %v2284, %v2280
    %2541 = vmatprep.subr.bf16.mxu0 %v2286
    %2542 = vmatpush1.bf16.msra.mxu0 %v2285
    %2543 = vmatprep.subr.bf16.mxu0 %v2290
    %2544 = vmatpush1.bf16.msra.mxu0 %v2289
    %2545 = vmatprep.subr.bf16.mxu0 %v2294
    %2546 = vmatpush1.bf16.msra.mxu0 %v2293
    %2547 = vmatprep.subr.bf16.mxu0 %v2298
    %2548 = vmatpush1.bf16.msra.mxu0 %v2297
    %2549 = vmatprep.subr.bf16.mxu0 %v2302
    %2550 = vmatpush1.bf16.msra.mxu0 %v2301
    %2551 = vmatprep.subr.bf16.mxu0 %v2306
    %2552 = vmatpush1.bf16.msra.mxu0 %v2305
    %2553 = vmatprep.subr.bf16.mxu0 %v2310
    %2554 = vmatpush1.bf16.msra.mxu0 %v2309
    %2555 = vmatprep.subr.bf16.mxu0 %v2314
    %2556 = vmatpush1.bf16.msra.mxu0 %v2313
    %2557 = vmatprep.subr.bf16.mxu0 %v2318
    %2558 = vmatpush1.bf16.msra.mxu0 %v2317
    %2559 = vmatprep.subr.bf16.mxu0 %v2322
    %2560 = vmatpush1.bf16.msra.mxu0 %v2321
    %2561 = vmatprep.subr.bf16.mxu0 %v2326
    %2562 = vmatpush1.bf16.msra.mxu0 %v2325
    %2563 = vmatprep.subr.bf16.mxu0 %v2330
    %2564 = vmatpush1.bf16.msra.mxu0 %v2329
    %2565 = vmatprep.subr.bf16.mxu0 %v2334
    %2566 = vmatpush1.bf16.msra.mxu0 %v2333
    %2567 = vmatprep.subr.bf16.mxu0 %v2338
    %2568 = vmatpush1.bf16.msra.mxu0 %v2337
    %2569 = vmatprep.subr.bf16.mxu0 %v2342
    %2570 = vmatpush1.bf16.msra.mxu0 %v2341
    %2571 = vmatprep.subr.bf16.mxu0 %v2346
    %2572 = vmatpush1.bf16.msra.mxu0 %v2345
    %2573 = vmatprep.mubr.bf16.mxu0 %v1748
    %2574 = vmatmul.mubr.bf16.gmra.mrb[0].mxu0 %v1747
    %v2575 = vpop.f32.mrb[0].mxu0
    %v2576 = vadd.f32 %v1884, %v2575
    %v2577 = vpop.f32.mrb[0].mxu0
    %v2578 = vadd.f32 %v1888, %v2577
    %v2579 = vpop.f32.mrb[0].mxu0
    %v2580 = vpop.f32.mrb[0].mxu0
    %2581 = vdwg.mxu0
    %2582 = vmatprep.subr.bf16.mxu0 %v2350
    %2583 = vmatpush1.bf16.msra.mxu0 %v2349
    %2584 = vmatprep.subr.bf16.mxu0 %v2354
    %2585 = vmatpush1.bf16.msra.mxu0 %v2353
    %2586 = vmatprep.subr.bf16.mxu0 %v2358
    %2587 = vmatpush1.bf16.msra.mxu0 %v2357
    %2588 = vmatprep.subr.bf16.mxu0 %v2362
    %2589 = vmatpush1.bf16.msra.mxu0 %v2361
    %2590 = vmatprep.subr.bf16.mxu0 %v2366
    %2591 = vmatpush1.bf16.msra.mxu0 %v2365
    %2592 = vmatprep.subr.bf16.mxu0 %v2370
    %2593 = vmatpush1.bf16.msra.mxu0 %v2369
    %2594 = vmatprep.subr.bf16.mxu0 %v2374
    %2595 = vmatpush1.bf16.msra.mxu0 %v2373
    %2596 = vmatprep.subr.bf16.mxu0 %v2378
    %2597 = vmatpush1.bf16.msra.mxu0 %v2377
    %2598 = vmatprep.subr.bf16.mxu0 %v2382
    %2599 = vmatpush1.bf16.msra.mxu0 %v2381
    %2600 = vmatprep.subr.bf16.mxu0 %v2386
    %2601 = vmatpush1.bf16.msra.mxu0 %v2385
    %2602 = vmatprep.subr.bf16.mxu0 %v2390
    %2603 = vmatpush1.bf16.msra.mxu0 %v2389
    %2604 = vmatprep.subr.bf16.mxu0 %v2394
    %2605 = vmatpush1.bf16.msra.mxu0 %v2393
    %2606 = vmatprep.subr.bf16.mxu0 %v2398
    %2607 = vmatpush1.bf16.msra.mxu0 %v2397
    %2608 = vmatprep.subr.bf16.mxu0 %v2402
    %2609 = vmatpush1.bf16.msra.mxu0 %v2401
    %2610 = vmatprep.subr.bf16.mxu0 %v2406
    %2611 = vmatpush1.bf16.msra.mxu0 %v2405
    %2612 = vmatprep.subr.bf16.mxu0 %v2410
    %2613 = vmatpush1.bf16.msra.mxu0 %v2409
    %2614 = vmatprep.mubr.bf16.mxu0 %v1750
    %2615 = vmatmul.mubr.bf16.gmra.mrb[0].mxu0 %v1749
    %v2616 = vpop.f32.mrb[0].mxu0
    %v2617 = vadd.f32 %v2576, %v2616
    %v2618 = vpop.f32.mrb[0].mxu0
    %v2619 = vadd.f32 %v2578, %v2618
    %v2620 = vpop.f32.mrb[0].mxu0
    %v2621 = vpop.f32.mrb[0].mxu0
    %2622 = vdwg.mxu0
    %2623 = vmatprep.subr.bf16.mxu0 %v2288
    %2624 = vmatpush1.bf16.msra.mxu0 %v2287
    %2625 = vmatprep.subr.bf16.mxu0 %v2292
    %2626 = vmatpush1.bf16.msra.mxu0 %v2291
    %2627 = vmatprep.subr.bf16.mxu0 %v2296
    %2628 = vmatpush1.bf16.msra.mxu0 %v2295
    %2629 = vmatprep.subr.bf16.mxu0 %v2300
    %2630 = vmatpush1.bf16.msra.mxu0 %v2299
    %2631 = vmatprep.subr.bf16.mxu0 %v2304
    %2632 = vmatpush1.bf16.msra.mxu0 %v2303
    %2633 = vmatprep.subr.bf16.mxu0 %v2308
    %2634 = vmatpush1.bf16.msra.mxu0 %v2307
    %2635 = vmatprep.subr.bf16.mxu0 %v2312
    %2636 = vmatpush1.bf16.msra.mxu0 %v2311
    %2637 = vmatprep.subr.bf16.mxu0 %v2316
    %2638 = vmatpush1.bf16.msra.mxu0 %v2315
    %2639 = vmatprep.subr.bf16.mxu0 %v2320
    %2640 = vmatpush1.bf16.msra.mxu0 %v2319
    %2641 = vmatprep.subr.bf16.mxu0 %v2324
    %2642 = vmatpush1.bf16.msra.mxu0 %v2323
    %2643 = vmatprep.subr.bf16.mxu0 %v2328
    %2644 = vmatpush1.bf16.msra.mxu0 %v2327
    %2645 = vmatprep.subr.bf16.mxu0 %v2332
    %2646 = vmatpush1.bf16.msra.mxu0 %v2331
    %2647 = vmatprep.subr.bf16.mxu0 %v2336
    %2648 = vmatpush1.bf16.msra.mxu0 %v2335
    %2649 = vmatprep.subr.bf16.mxu0 %v2340
    %2650 = vmatpush1.bf16.msra.mxu0 %v2339
    %2651 = vmatprep.subr.bf16.mxu0 %v2344
    %2652 = vmatpush1.bf16.msra.mxu0 %v2343
    %2653 = vmatprep.subr.bf16.mxu0 %v2348
    %2654 = vmatpush1.bf16.msra.mxu0 %v2347
    %2655 = vmatprep.mubr.bf16.mxu0 %v1748
    %2656 = vmatmul.mubr.bf16.gmra.mrb[0].mxu0 %v1747
    %v2657 = vpop.f32.mrb[0].mxu0
    %v2658 = vadd.f32 %v1892, %v2657
    %v2659 = vpop.f32.mrb[0].mxu0
    %v2660 = vadd.f32 %v1896, %v2659
    %v2661 = vpop.f32.mrb[0].mxu0
    %v2662 = vpop.f32.mrb[0].mxu0
    %2663 = vdwg.mxu0
    %2664 = vmatprep.subr.bf16.mxu0 %v2352
    %2665 = vmatpush1.bf16.msra.mxu0 %v2351
    %2666 = vmatprep.subr.bf16.mxu0 %v2356
    %2667 = vmatpush1.bf16.msra.mxu0 %v2355
    %2668 = vmatprep.subr.bf16.mxu0 %v2360
    %2669 = vmatpush1.bf16.msra.mxu0 %v2359
    %2670 = vmatprep.subr.bf16.mxu0 %v2364
    %2671 = vmatpush1.bf16.msra.mxu0 %v2363
    %2672 = vmatprep.subr.bf16.mxu0 %v2368
    %2673 = vmatpush1.bf16.msra.mxu0 %v2367
    %2674 = vmatprep.subr.bf16.mxu0 %v2372
    %2675 = vmatpush1.bf16.msra.mxu0 %v2371
    %2676 = vmatprep.subr.bf16.mxu0 %v2376
    %2677 = vmatpush1.bf16.msra.mxu0 %v2375
    %2678 = vmatprep.subr.bf16.mxu0 %v2380
    %2679 = vmatpush1.bf16.msra.mxu0 %v2379
    %2680 = vmatprep.subr.bf16.mxu0 %v2384
    %2681 = vmatpush1.bf16.msra.mxu0 %v2383
    %2682 = vmatprep.subr.bf16.mxu0 %v2388
    %2683 = vmatpush1.bf16.msra.mxu0 %v2387
    %2684 = vmatprep.subr.bf16.mxu0 %v2392
    %2685 = vmatpush1.bf16.msra.mxu0 %v2391
    %2686 = vmatprep.subr.bf16.mxu0 %v2396
    %2687 = vmatpush1.bf16.msra.mxu0 %v2395
    %2688 = vmatprep.subr.bf16.mxu0 %v2400
    %2689 = vmatpush1.bf16.msra.mxu0 %v2399
    %2690 = vmatprep.subr.bf16.mxu0 %v2404
    %2691 = vmatpush1.bf16.msra.mxu0 %v2403
    %2692 = vmatprep.subr.bf16.mxu0 %v2408
    %2693 = vmatpush1.bf16.msra.mxu0 %v2407
    %2694 = vmatprep.subr.bf16.mxu0 %v2412
    %2695 = vmatpush1.bf16.msra.mxu0 %v2411
    %2696 = vmatprep.mubr.bf16.mxu0 %v1750
    %2697 = vmatmul.mubr.bf16.gmra.mrb[0].mxu0 %v1749
    %v2698 = vpop.f32.mrb[0].mxu0
    %v2699 = vadd.f32 %v2658, %v2698
    %v2700 = vpop.f32.mrb[0].mxu0
    %v2701 = vadd.f32 %v2660, %v2700
    %v2702 = vpop.f32.mrb[0].mxu0
    %v2703 = vpop.f32.mrb[0].mxu0
    %2704 = vdwg.mxu0
    %v2705 = vtanh.pop %v2617
    %v2706 = vtanh.pop %v2619
    %v2707 = vtanh.pop %v2699
    %v2708 = vtanh.pop %v2701
    %v2709 = vpack.c.bf16 %v2705, %v2705
    %v2710 = vpack.c.bf16 %v2706, %v2706
    %v2711 = vpack.c.bf16 %v2707, %v2707
    %v2712 = vpack.c.bf16 %v2708, %v2708
    %v2713 = vld [vmem:[#allocation11] sm:$0xff]
    %v2714 = vld [vmem:[#allocation11 + $0x8] sm:$0xff]
    %v2715 = vld [vmem:[#allocation11 + $0x10] sm:$0xff]
    %v2716 = vld [vmem:[#allocation11 + $0x18] sm:$0xff]
    %v2717 = vld [vmem:[#allocation11 + $0x20] sm:$0xff]
    %v2718 = vld [vmem:[#allocation11 + $0x28] sm:$0xff]
    %v2719 = vld [vmem:[#allocation11 + $0x30] sm:$0xff]
    %v2720 = vld [vmem:[#allocation11 + $0x38] sm:$0xff]
    %v2721 = vld [vmem:[#allocation11 + $0x40] sm:$0xff]
    %v2722 = vld [vmem:[#allocation11 + $0x48] sm:$0xff]
    %v2723 = vld [vmem:[#allocation11 + $0x50] sm:$0xff]
    %v2724 = vld [vmem:[#allocation11 + $0x58] sm:$0xff]
    %v2725 = vld [vmem:[#allocation11 + $0x60] sm:$0xff]
    %v2726 = vld [vmem:[#allocation11 + $0x68] sm:$0xff]
    %v2727 = vld [vmem:[#allocation11 + $0x70] sm:$0xff]
    %v2728 = vld [vmem:[#allocation11 + $0x78] sm:$0xff]
    %v2729 = vld [vmem:[#allocation11 + $0x80] sm:$0xff]
    %v2730 = vld [vmem:[#allocation11 + $0x88] sm:$0xff]
    %v2731 = vld [vmem:[#allocation11 + $0x90] sm:$0xff]
    %v2732 = vld [vmem:[#allocation11 + $0x98] sm:$0xff]
    %v2733 = vld [vmem:[#allocation11 + $0xa0] sm:$0xff]
    %v2734 = vld [vmem:[#allocation11 + $0xa8] sm:$0xff]
    %v2735 = vld [vmem:[#allocation11 + $0xb0] sm:$0xff]
    %v2736 = vld [vmem:[#allocation11 + $0xb8] sm:$0xff]
    %v2737 = vld [vmem:[#allocation11 + $0xc0] sm:$0xff]
    %v2738 = vld [vmem:[#allocation11 + $0xc8] sm:$0xff]
    %v2739 = vld [vmem:[#allocation11 + $0xd0] sm:$0xff]
    %v2740 = vld [vmem:[#allocation11 + $0xd8] sm:$0xff]
    %v2741 = vld [vmem:[#allocation11 + $0xe0] sm:$0xff]
    %v2742 = vld [vmem:[#allocation11 + $0xe8] sm:$0xff]
    %v2743 = vld [vmem:[#allocation11 + $0xf0] sm:$0xff]
    %v2744 = vld [vmem:[#allocation11 + $0xf8] sm:$0xff]
    %v2745 = vld [vmem:[#allocation11 + $0x100] sm:$0xff]
    %v2746 = vld [vmem:[#allocation11 + $0x108] sm:$0xff]
    %v2747 = vld [vmem:[#allocation11 + $0x110] sm:$0xff]
    %v2748 = vld [vmem:[#allocation11 + $0x118] sm:$0xff]
    %v2749 = vld [vmem:[#allocation11 + $0x120] sm:$0xff]
    %v2750 = vld [vmem:[#allocation11 + $0x128] sm:$0xff]
    %v2751 = vld [vmem:[#allocation11 + $0x130] sm:$0xff]
    %v2752 = vld [vmem:[#allocation11 + $0x138] sm:$0xff]
    %v2753 = vld [vmem:[#allocation11 + $0x140] sm:$0xff]
    %v2754 = vld [vmem:[#allocation11 + $0x148] sm:$0xff]
    %v2755 = vld [vmem:[#allocation11 + $0x150] sm:$0xff]
    %v2756 = vld [vmem:[#allocation11 + $0x158] sm:$0xff]
    %v2757 = vld [vmem:[#allocation11 + $0x160] sm:$0xff]
    %v2758 = vld [vmem:[#allocation11 + $0x168] sm:$0xff]
    %v2759 = vld [vmem:[#allocation11 + $0x170] sm:$0xff]
    %v2760 = vld [vmem:[#allocation11 + $0x178] sm:$0xff]
    %v2761 = vld [vmem:[#allocation11 + $0x180] sm:$0xff]
    %v2762 = vld [vmem:[#allocation11 + $0x188] sm:$0xff]
    %v2763 = vld [vmem:[#allocation11 + $0x190] sm:$0xff]
    %v2764 = vld [vmem:[#allocation11 + $0x198] sm:$0xff]
    %v2765 = vld [vmem:[#allocation11 + $0x1a0] sm:$0xff]
    %v2766 = vld [vmem:[#allocation11 + $0x1a8] sm:$0xff]
    %v2767 = vld [vmem:[#allocation11 + $0x1b0] sm:$0xff]
    %v2768 = vld [vmem:[#allocation11 + $0x1b8] sm:$0xff]
    %v2769 = vld [vmem:[#allocation11 + $0x1c0] sm:$0xff]
    %v2770 = vld [vmem:[#allocation11 + $0x1c8] sm:$0xff]
    %v2771 = vld [vmem:[#allocation11 + $0x1d0] sm:$0xff]
    %v2772 = vld [vmem:[#allocation11 + $0x1d8] sm:$0xff]
    %v2773 = vld [vmem:[#allocation11 + $0x1e0] sm:$0xff]
    %v2774 = vld [vmem:[#allocation11 + $0x1e8] sm:$0xff]
    %v2775 = vld [vmem:[#allocation11 + $0x1f0] sm:$0xff]
    %v2776 = vld [vmem:[#allocation11 + $0x1f8] sm:$0xff]
    %v2777 = vld [vmem:[%s10] sm:$0x3]
    %v2779 = vlaneseq
    %v2780 = vshrl.u32 %v2779, 7
    %v2781 = vsub.s32 0, %v2780
    %v2782 = vrot.slane %v2777, %v2781
    %v2783 = vlaneseq
    %v2784 = vshrl.u32 %v2783, 7
    %v2785 = vsub.s32 1, %v2784
    %v2786 = vrot.slane %v2777, %v2785
    %v2853 = vunpack.c.l.b16 %v2713
    %v2854 = vunpack.c.h.b16 %v2713
    %v2855 = vunpack.c.l.b16 %v2714
    %v2856 = vunpack.c.h.b16 %v2714
    %v2857 = vunpack.c.l.b16 %v2715
    %v2858 = vunpack.c.h.b16 %v2715
    %v2859 = vunpack.c.l.b16 %v2716
    %v2860 = vunpack.c.h.b16 %v2716
    %v2861 = vunpack.c.l.b16 %v2717
    %v2862 = vunpack.c.h.b16 %v2717
    %v2863 = vunpack.c.l.b16 %v2718
    %v2864 = vunpack.c.h.b16 %v2718
    %v2865 = vunpack.c.l.b16 %v2719
    %v2866 = vunpack.c.h.b16 %v2719
    %v2867 = vunpack.c.l.b16 %v2720
    %v2868 = vunpack.c.h.b16 %v2720
    %v2869 = vunpack.c.l.b16 %v2721
    %v2870 = vunpack.c.h.b16 %v2721
    %v2871 = vunpack.c.l.b16 %v2722
    %v2872 = vunpack.c.h.b16 %v2722
    %v2873 = vunpack.c.l.b16 %v2723
    %v2874 = vunpack.c.h.b16 %v2723
    %v2875 = vunpack.c.l.b16 %v2724
    %v2876 = vunpack.c.h.b16 %v2724
    %v2877 = vunpack.c.l.b16 %v2725
    %v2878 = vunpack.c.h.b16 %v2725
    %v2879 = vunpack.c.l.b16 %v2726
    %v2880 = vunpack.c.h.b16 %v2726
    %v2881 = vunpack.c.l.b16 %v2727
    %v2882 = vunpack.c.h.b16 %v2727
    %v2883 = vunpack.c.l.b16 %v2728
    %v2884 = vunpack.c.h.b16 %v2728
    %v2885 = vunpack.c.l.b16 %v2729
    %v2886 = vunpack.c.h.b16 %v2729
    %v2887 = vunpack.c.l.b16 %v2730
    %v2888 = vunpack.c.h.b16 %v2730
    %v2889 = vunpack.c.l.b16 %v2731
    %v2890 = vunpack.c.h.b16 %v2731
    %v2891 = vunpack.c.l.b16 %v2732
    %v2892 = vunpack.c.h.b16 %v2732
    %v2893 = vunpack.c.l.b16 %v2733
    %v2894 = vunpack.c.h.b16 %v2733
    %v2895 = vunpack.c.l.b16 %v2734
    %v2896 = vunpack.c.h.b16 %v2734
    %v2897 = vunpack.c.l.b16 %v2735
    %v2898 = vunpack.c.h.b16 %v2735
    %v2899 = vunpack.c.l.b16 %v2736
    %v2900 = vunpack.c.h.b16 %v2736
    %v2901 = vunpack.c.l.b16 %v2737
    %v2902 = vunpack.c.h.b16 %v2737
    %v2903 = vunpack.c.l.b16 %v2738
    %v2904 = vunpack.c.h.b16 %v2738
    %v2905 = vunpack.c.l.b16 %v2739
    %v2906 = vunpack.c.h.b16 %v2739
    %v2907 = vunpack.c.l.b16 %v2740
    %v2908 = vunpack.c.h.b16 %v2740
    %v2909 = vunpack.c.l.b16 %v2741
    %v2910 = vunpack.c.h.b16 %v2741
    %v2911 = vunpack.c.l.b16 %v2742
    %v2912 = vunpack.c.h.b16 %v2742
    %v2913 = vunpack.c.l.b16 %v2743
    %v2914 = vunpack.c.h.b16 %v2743
    %v2915 = vunpack.c.l.b16 %v2744
    %v2916 = vunpack.c.h.b16 %v2744
    %v2917 = vunpack.c.l.b16 %v2745
    %v2918 = vunpack.c.h.b16 %v2745
    %v2919 = vunpack.c.l.b16 %v2746
    %v2920 = vunpack.c.h.b16 %v2746
    %v2921 = vunpack.c.l.b16 %v2747
    %v2922 = vunpack.c.h.b16 %v2747
    %v2923 = vunpack.c.l.b16 %v2748
    %v2924 = vunpack.c.h.b16 %v2748
    %v2925 = vunpack.c.l.b16 %v2749
    %v2926 = vunpack.c.h.b16 %v2749
    %v2927 = vunpack.c.l.b16 %v2750
    %v2928 = vunpack.c.h.b16 %v2750
    %v2929 = vunpack.c.l.b16 %v2751
    %v2930 = vunpack.c.h.b16 %v2751
    %v2931 = vunpack.c.l.b16 %v2752
    %v2932 = vunpack.c.h.b16 %v2752
    %v2933 = vunpack.c.l.b16 %v2753
    %v2934 = vunpack.c.h.b16 %v2753
    %v2935 = vunpack.c.l.b16 %v2754
    %v2936 = vunpack.c.h.b16 %v2754
    %v2937 = vunpack.c.l.b16 %v2755
    %v2938 = vunpack.c.h.b16 %v2755
    %v2939 = vunpack.c.l.b16 %v2756
    %v2940 = vunpack.c.h.b16 %v2756
    %v2941 = vunpack.c.l.b16 %v2757
    %v2942 = vunpack.c.h.b16 %v2757
    %v2943 = vunpack.c.l.b16 %v2758
    %v2944 = vunpack.c.h.b16 %v2758
    %v2945 = vunpack.c.l.b16 %v2759
    %v2946 = vunpack.c.h.b16 %v2759
    %v2947 = vunpack.c.l.b16 %v2760
    %v2948 = vunpack.c.h.b16 %v2760
    %v2949 = vunpack.c.l.b16 %v2761
    %v2950 = vunpack.c.h.b16 %v2761
    %v2951 = vunpack.c.l.b16 %v2762
    %v2952 = vunpack.c.h.b16 %v2762
    %v2953 = vunpack.c.l.b16 %v2763
    %v2954 = vunpack.c.h.b16 %v2763
    %v2955 = vunpack.c.l.b16 %v2764
    %v2956 = vunpack.c.h.b16 %v2764
    %v2957 = vunpack.c.l.b16 %v2765
    %v2958 = vunpack.c.h.b16 %v2765
    %v2959 = vunpack.c.l.b16 %v2766
    %v2960 = vunpack.c.h.b16 %v2766
    %v2961 = vunpack.c.l.b16 %v2767
    %v2962 = vunpack.c.h.b16 %v2767
    %v2963 = vunpack.c.l.b16 %v2768
    %v2964 = vunpack.c.h.b16 %v2768
    %v2965 = vunpack.c.l.b16 %v2769
    %v2966 = vunpack.c.h.b16 %v2769
    %v2967 = vunpack.c.l.b16 %v2770
    %v2968 = vunpack.c.h.b16 %v2770
    %v2969 = vunpack.c.l.b16 %v2771
    %v2970 = vunpack.c.h.b16 %v2771
    %v2971 = vunpack.c.l.b16 %v2772
    %v2972 = vunpack.c.h.b16 %v2772
    %v2973 = vunpack.c.l.b16 %v2773
    %v2974 = vunpack.c.h.b16 %v2773
    %v2975 = vunpack.c.l.b16 %v2774
    %v2976 = vunpack.c.h.b16 %v2774
    %v2977 = vunpack.c.l.b16 %v2775
    %v2978 = vunpack.c.h.b16 %v2775
    %v2979 = vunpack.c.l.b16 %v2776
    %v2980 = vunpack.c.h.b16 %v2776
    %v2981 = vpack.c.b16 %v2855, %v2853
    %v2982 = vpack.c.b16 %v2856, %v2854
    %v2983 = vpack.c.b16 %v2859, %v2857
    %v2984 = vpack.c.b16 %v2860, %v2858
    %v2985 = vpack.c.b16 %v2863, %v2861
    %v2986 = vpack.c.b16 %v2864, %v2862
    %v2987 = vpack.c.b16 %v2867, %v2865
    %v2988 = vpack.c.b16 %v2868, %v2866
    %v2989 = vpack.c.b16 %v2871, %v2869
    %v2990 = vpack.c.b16 %v2872, %v2870
    %v2991 = vpack.c.b16 %v2875, %v2873
    %v2992 = vpack.c.b16 %v2876, %v2874
    %v2993 = vpack.c.b16 %v2879, %v2877
    %v2994 = vpack.c.b16 %v2880, %v2878
    %v2995 = vpack.c.b16 %v2883, %v2881
    %v2996 = vpack.c.b16 %v2884, %v2882
    %v2997 = vpack.c.b16 %v2887, %v2885
    %v2998 = vpack.c.b16 %v2888, %v2886
    %v2999 = vpack.c.b16 %v2891, %v2889
    %v3000 = vpack.c.b16 %v2892, %v2890
    %v3001 = vpack.c.b16 %v2895, %v2893
    %v3002 = vpack.c.b16 %v2896, %v2894
    %v3003 = vpack.c.b16 %v2899, %v2897
    %v3004 = vpack.c.b16 %v2900, %v2898
    %v3005 = vpack.c.b16 %v2903, %v2901
    %v3006 = vpack.c.b16 %v2904, %v2902
    %v3007 = vpack.c.b16 %v2907, %v2905
    %v3008 = vpack.c.b16 %v2908, %v2906
    %v3009 = vpack.c.b16 %v2911, %v2909
    %v3010 = vpack.c.b16 %v2912, %v2910
    %v3011 = vpack.c.b16 %v2915, %v2913
    %v3012 = vpack.c.b16 %v2916, %v2914
    %v3013 = vpack.c.b16 %v2919, %v2917
    %v3014 = vpack.c.b16 %v2920, %v2918
    %v3015 = vpack.c.b16 %v2923, %v2921
    %v3016 = vpack.c.b16 %v2924, %v2922
    %v3017 = vpack.c.b16 %v2927, %v2925
    %v3018 = vpack.c.b16 %v2928, %v2926
    %v3019 = vpack.c.b16 %v2931, %v2929
    %v3020 = vpack.c.b16 %v2932, %v2930
    %v3021 = vpack.c.b16 %v2935, %v2933
    %v3022 = vpack.c.b16 %v2936, %v2934
    %v3023 = vpack.c.b16 %v2939, %v2937
    %v3024 = vpack.c.b16 %v2940, %v2938
    %v3025 = vpack.c.b16 %v2943, %v2941
    %v3026 = vpack.c.b16 %v2944, %v2942
    %v3027 = vpack.c.b16 %v2947, %v2945
    %v3028 = vpack.c.b16 %v2948, %v2946
    %v3029 = vpack.c.b16 %v2951, %v2949
    %v3030 = vpack.c.b16 %v2952, %v2950
    %v3031 = vpack.c.b16 %v2955, %v2953
    %v3032 = vpack.c.b16 %v2956, %v2954
    %v3033 = vpack.c.b16 %v2959, %v2957
    %v3034 = vpack.c.b16 %v2960, %v2958
    %v3035 = vpack.c.b16 %v2963, %v2961
    %v3036 = vpack.c.b16 %v2964, %v2962
    %v3037 = vpack.c.b16 %v2967, %v2965
    %v3038 = vpack.c.b16 %v2968, %v2966
    %v3039 = vpack.c.b16 %v2971, %v2969
    %v3040 = vpack.c.b16 %v2972, %v2970
    %v3041 = vpack.c.b16 %v2975, %v2973
    %v3042 = vpack.c.b16 %v2976, %v2974
    %v3043 = vpack.c.b16 %v2979, %v2977
    %v3044 = vpack.c.b16 %v2980, %v2978
    %3109 = vmatprep.subr.bf16.mxu0 %v2982
    %3110 = vmatpush1.bf16.msra.mxu0 %v2981
    %3111 = vmatprep.subr.bf16.mxu0 %v2984
    %3112 = vmatpush1.bf16.msra.mxu0 %v2983
    %3113 = vmatprep.subr.bf16.mxu0 %v2986
    %3114 = vmatpush1.bf16.msra.mxu0 %v2985
    %3115 = vmatprep.subr.bf16.mxu0 %v2988
    %3116 = vmatpush1.bf16.msra.mxu0 %v2987
    %3117 = vmatprep.subr.bf16.mxu0 %v2990
    %3118 = vmatpush1.bf16.msra.mxu0 %v2989
    %3119 = vmatprep.subr.bf16.mxu0 %v2992
    %3120 = vmatpush1.bf16.msra.mxu0 %v2991
    %3121 = vmatprep.subr.bf16.mxu0 %v2994
    %3122 = vmatpush1.bf16.msra.mxu0 %v2993
    %3123 = vmatprep.subr.bf16.mxu0 %v2996
    %3124 = vmatpush1.bf16.msra.mxu0 %v2995
    %3125 = vmatprep.subr.bf16.mxu0 %v2998
    %3126 = vmatpush1.bf16.msra.mxu0 %v2997
    %3127 = vmatprep.subr.bf16.mxu0 %v3000
    %3128 = vmatpush1.bf16.msra.mxu0 %v2999
    %3129 = vmatprep.subr.bf16.mxu0 %v3002
    %3130 = vmatpush1.bf16.msra.mxu0 %v3001
    %3131 = vmatprep.subr.bf16.mxu0 %v3004
    %3132 = vmatpush1.bf16.msra.mxu0 %v3003
    %3133 = vmatprep.subr.bf16.mxu0 %v3006
    %3134 = vmatpush1.bf16.msra.mxu0 %v3005
    %3135 = vmatprep.subr.bf16.mxu0 %v3008
    %3136 = vmatpush1.bf16.msra.mxu0 %v3007
    %3137 = vmatprep.subr.bf16.mxu0 %v3010
    %3138 = vmatpush1.bf16.msra.mxu0 %v3009
    %3139 = vmatprep.subr.bf16.mxu0 %v3012
    %3140 = vmatpush1.bf16.msra.mxu0 %v3011
    %3141 = vmatprep.mubr.bf16.mxu0 %v2710
    %3142 = vmatmul.mubr.bf16.gmra.mrb[0].mxu0 %v2709
    %v3143 = vpop.f32.mrb[0].mxu0
    %v3144 = vadd.f32 %v2782, %v3143
    %v3145 = vpop.f32.mrb[0].mxu0
    %v3146 = vadd.f32 %v2786, %v3145
    %v3147 = vpop.f32.mrb[0].mxu0
    %v3148 = vpop.f32.mrb[0].mxu0
    %3149 = vdwg.mxu0
    %3150 = vmatprep.subr.bf16.mxu0 %v3014
    %3151 = vmatpush1.bf16.msra.mxu0 %v3013
    %3152 = vmatprep.subr.bf16.mxu0 %v3016
    %3153 = vmatpush1.bf16.msra.mxu0 %v3015
    %3154 = vmatprep.subr.bf16.mxu0 %v3018
    %3155 = vmatpush1.bf16.msra.mxu0 %v3017
    %3156 = vmatprep.subr.bf16.mxu0 %v3020
    %3157 = vmatpush1.bf16.msra.mxu0 %v3019
    %3158 = vmatprep.subr.bf16.mxu0 %v3022
    %3159 = vmatpush1.bf16.msra.mxu0 %v3021
    %3160 = vmatprep.subr.bf16.mxu0 %v3024
    %3161 = vmatpush1.bf16.msra.mxu0 %v3023
    %3162 = vmatprep.subr.bf16.mxu0 %v3026
    %3163 = vmatpush1.bf16.msra.mxu0 %v3025
    %3164 = vmatprep.subr.bf16.mxu0 %v3028
    %3165 = vmatpush1.bf16.msra.mxu0 %v3027
    %3166 = vmatprep.subr.bf16.mxu0 %v3030
    %3167 = vmatpush1.bf16.msra.mxu0 %v3029
    %3168 = vmatprep.subr.bf16.mxu0 %v3032
    %3169 = vmatpush1.bf16.msra.mxu0 %v3031
    %3170 = vmatprep.subr.bf16.mxu0 %v3034
    %3171 = vmatpush1.bf16.msra.mxu0 %v3033
    %3172 = vmatprep.subr.bf16.mxu0 %v3036
    %3173 = vmatpush1.bf16.msra.mxu0 %v3035
    %3174 = vmatprep.subr.bf16.mxu0 %v3038
    %3175 = vmatpush1.bf16.msra.mxu0 %v3037
    %3176 = vmatprep.subr.bf16.mxu0 %v3040
    %3177 = vmatpush1.bf16.msra.mxu0 %v3039
    %3178 = vmatprep.subr.bf16.mxu0 %v3042
    %3179 = vmatpush1.bf16.msra.mxu0 %v3041
    %3180 = vmatprep.subr.bf16.mxu0 %v3044
    %3181 = vmatpush1.bf16.msra.mxu0 %v3043
    %3182 = vmatprep.mubr.bf16.mxu0 %v2712
    %3183 = vmatmul.mubr.bf16.gmra.mrb[0].mxu0 %v2711
    %v3184 = vpop.f32.mrb[0].mxu0
    %v3185 = vadd.f32 %v3144, %v3184
    %v3186 = vpop.f32.mrb[0].mxu0
    %v3187 = vadd.f32 %v3146, %v3186
    %v3188 = vpop.f32.mrb[0].mxu0
    %v3189 = vpop.f32.mrb[0].mxu0
    %3190 = vdwg.mxu0
    %v3191 = vtanh.pop %v3185
    %v3192 = vtanh.pop %v3187
    %v3193 = vpack.c.bf16 %v3191, %v3191
    %v3194 = vpack.c.bf16 %v3192, %v3192
    %v3195 = vld [vmem:[#allocation13] sm:$0xf]
    %v3196 = vld [vmem:[#allocation13 + $0x4] sm:$0xf]
    %v3197 = vld [vmem:[#allocation13 + $0x8] sm:$0xf]
    %v3198 = vld [vmem:[#allocation13 + $0xc] sm:$0xf]
    %v3199 = vld [vmem:[#allocation13 + $0x10] sm:$0xf]
    %v3200 = vld [vmem:[#allocation13 + $0x14] sm:$0xf]
    %v3201 = vld [vmem:[#allocation13 + $0x18] sm:$0xf]
    %v3202 = vld [vmem:[#allocation13 + $0x1c] sm:$0xf]
    %v3203 = vld [vmem:[#allocation13 + $0x20] sm:$0xf]
    %v3204 = vld [vmem:[#allocation13 + $0x24] sm:$0xf]
    %v3205 = vld [vmem:[#allocation13 + $0x28] sm:$0xf]
    %v3206 = vld [vmem:[#allocation13 + $0x2c] sm:$0xf]
    %v3207 = vld [vmem:[#allocation13 + $0x30] sm:$0xf]
    %v3208 = vld [vmem:[#allocation13 + $0x34] sm:$0xf]
    %v3209 = vld [vmem:[#allocation13 + $0x38] sm:$0xf]
    %v3210 = vld [vmem:[#allocation13 + $0x3c] sm:$0xf]
    %v3211 = vld [vmem:[#allocation13 + $0x40] sm:$0xf]
    %v3212 = vld [vmem:[#allocation13 + $0x44] sm:$0xf]
    %v3213 = vld [vmem:[#allocation13 + $0x48] sm:$0xf]
    %v3214 = vld [vmem:[#allocation13 + $0x4c] sm:$0xf]
    %v3215 = vld [vmem:[#allocation13 + $0x50] sm:$0xf]
    %v3216 = vld [vmem:[#allocation13 + $0x54] sm:$0xf]
    %v3217 = vld [vmem:[#allocation13 + $0x58] sm:$0xf]
    %v3218 = vld [vmem:[#allocation13 + $0x5c] sm:$0xf]
    %v3219 = vld [vmem:[#allocation13 + $0x60] sm:$0xf]
    %v3220 = vld [vmem:[#allocation13 + $0x64] sm:$0xf]
    %v3221 = vld [vmem:[#allocation13 + $0x68] sm:$0xf]
    %v3222 = vld [vmem:[#allocation13 + $0x6c] sm:$0xf]
    %v3223 = vld [vmem:[#allocation13 + $0x70] sm:$0xf]
    %v3224 = vld [vmem:[#allocation13 + $0x74] sm:$0xf]
    %v3225 = vld [vmem:[#allocation13 + $0x78] sm:$0xf]
    %v3226 = vld [vmem:[#allocation13 + $0x7c] sm:$0xf]
    %v3227 = vld [vmem:[%s12] sm:$0x1]
    %v3229 = vlaneseq
    %v3230 = vshrl.u32 %v3229, 7
    %v3231 = vsub.s32 0, %v3230
    %v3232 = vrot.slane %v3227, %v3231
    %v3266 = vunpack.c.l.b16 %v3195
    %v3267 = vunpack.c.l.b16 %v3196
    %v3268 = vunpack.c.l.b16 %v3197
    %v3269 = vunpack.c.l.b16 %v3198
    %v3270 = vunpack.c.l.b16 %v3199
    %v3271 = vunpack.c.l.b16 %v3200
    %v3272 = vunpack.c.l.b16 %v3201
    %v3273 = vunpack.c.l.b16 %v3202
    %v3274 = vunpack.c.l.b16 %v3203
    %v3275 = vunpack.c.l.b16 %v3204
    %v3276 = vunpack.c.l.b16 %v3205
    %v3277 = vunpack.c.l.b16 %v3206
    %v3278 = vunpack.c.l.b16 %v3207
    %v3279 = vunpack.c.l.b16 %v3208
    %v3280 = vunpack.c.l.b16 %v3209
    %v3281 = vunpack.c.l.b16 %v3210
    %v3282 = vunpack.c.l.b16 %v3211
    %v3283 = vunpack.c.l.b16 %v3212
    %v3284 = vunpack.c.l.b16 %v3213
    %v3285 = vunpack.c.l.b16 %v3214
    %v3286 = vunpack.c.l.b16 %v3215
    %v3287 = vunpack.c.l.b16 %v3216
    %v3288 = vunpack.c.l.b16 %v3217
    %v3289 = vunpack.c.l.b16 %v3218
    %v3290 = vunpack.c.l.b16 %v3219
    %v3291 = vunpack.c.l.b16 %v3220
    %v3292 = vunpack.c.l.b16 %v3221
    %v3293 = vunpack.c.l.b16 %v3222
    %v3294 = vunpack.c.l.b16 %v3223
    %v3295 = vunpack.c.l.b16 %v3224
    %v3296 = vunpack.c.l.b16 %v3225
    %v3297 = vunpack.c.l.b16 %v3226
    %v3298 = vpack.c.b16 %v3267, %v3266
    %v3299 = vpack.c.b16 %v3269, %v3268
    %v3300 = vpack.c.b16 %v3271, %v3270
    %v3301 = vpack.c.b16 %v3273, %v3272
    %v3302 = vpack.c.b16 %v3275, %v3274
    %v3303 = vpack.c.b16 %v3277, %v3276
    %v3304 = vpack.c.b16 %v3279, %v3278
    %v3305 = vpack.c.b16 %v3281, %v3280
    %v3306 = vpack.c.b16 %v3283, %v3282
    %v3307 = vpack.c.b16 %v3285, %v3284
    %v3308 = vpack.c.b16 %v3287, %v3286
    %v3309 = vpack.c.b16 %v3289, %v3288
    %v3310 = vpack.c.b16 %v3291, %v3290
    %v3311 = vpack.c.b16 %v3293, %v3292
    %v3312 = vpack.c.b16 %v3295, %v3294
    %v3313 = vpack.c.b16 %v3297, %v3296
    %3330 = vmatprep.subr.bf16.mxu0 0
    %3331 = vmatpush1.bf16.msra.mxu0 %v3298
    %3332 = vmatprep.subr.bf16.mxu0 0
    %3333 = vmatpush1.bf16.msra.mxu0 %v3299
    %3334 = vmatprep.subr.bf16.mxu0 0
    %3335 = vmatpush1.bf16.msra.mxu0 %v3300
    %3336 = vmatprep.subr.bf16.mxu0 0
    %3337 = vmatpush1.bf16.msra.mxu0 %v3301
    %3338 = vmatprep.subr.bf16.mxu0 0
    %3339 = vmatpush1.bf16.msra.mxu0 %v3302
    %3340 = vmatprep.subr.bf16.mxu0 0
    %3341 = vmatpush1.bf16.msra.mxu0 %v3303
    %3342 = vmatprep.subr.bf16.mxu0 0
    %3343 = vmatpush1.bf16.msra.mxu0 %v3304
    %3344 = vmatprep.subr.bf16.mxu0 0
    %3345 = vmatpush1.bf16.msra.mxu0 %v3305
    %3346 = vmatprep.subr.bf16.mxu0 0
    %3347 = vmatpush1.bf16.msra.mxu0 %v3306
    %3348 = vmatprep.subr.bf16.mxu0 0
    %3349 = vmatpush1.bf16.msra.mxu0 %v3307
    %3350 = vmatprep.subr.bf16.mxu0 0
    %3351 = vmatpush1.bf16.msra.mxu0 %v3308
    %3352 = vmatprep.subr.bf16.mxu0 0
    %3353 = vmatpush1.bf16.msra.mxu0 %v3309
    %3354 = vmatprep.subr.bf16.mxu0 0
    %3355 = vmatpush1.bf16.msra.mxu0 %v3310
    %3356 = vmatprep.subr.bf16.mxu0 0
    %3357 = vmatpush1.bf16.msra.mxu0 %v3311
    %3358 = vmatprep.subr.bf16.mxu0 0
    %3359 = vmatpush1.bf16.msra.mxu0 %v3312
    %3360 = vmatprep.subr.bf16.mxu0 0
    %3361 = vmatpush1.bf16.msra.mxu0 %v3313
    %3362 = vmatprep.mubr.bf16.mxu0 %v3194
    %3363 = vmatmul.mubr.bf16.gmra.mrb[0].mxu0 %v3193
    %v3364 = vpop.f32.mrb[0].mxu0
    %v3365 = vadd.f32 %v3232, %v3364
    %v3366 = vpop.f32.mrb[0].mxu0
    %v3367 = vpop.f32.mrb[0].mxu0
    %v3368 = vpop.f32.mrb[0].mxu0
    %3369 = vdwg.mxu0
    %v3370 = vlaneseq
    %v3371 = vand.u32 %v3370, 127
    %vm3372 = vcmp.lt.s32.totalorder %v3371, 16
    %v3373 = vsel %vm3372, %v3365, -1e+30
    %3374 = vmax.xlane.f32.xlu0 %v3373
    %v3375 = vpop.xlane.xlu0 %3374
    %v3376 = vsub.f32 %v3373, %v3375
    %v3377 = vmul.f32 %v3376, 1.442695
    %v3378 = vpow.pop %v3377
    %v3379 = vsel %vm3372, %v3378, 0.0
    %3380 = vadd.xlane.f32.xlu0 %v3379
    %v3381 = vpop.xlane.xlu0 %3380
    %v3382 = vrcp.pop %v3381
    %v3383 = vmul.f32 %v3379, %v3382
    %vm3384 = vcmp.eq.s32.totalorder %v3371, 16
    %v3385 = vsel %vm3384, %v3365, 0.0
    %v3386 = vadd.f32 %v3383, %v3385
    %3387 = vst [vmem:[#allocation14] sm:$0xff] %v3386
    // Predicated region
    $region82: #{tpu_custom_call.1} parent=1 // pred_check
      _
    $region83: #{tpu_custom_call.1} parent=1 // pred_check_branch
      %3389 = sbr.rel (0) target = $region85
    $region84: #{tpu_custom_call.1} parent=1 // pred_region
      %s3391 = ssub.s32 128, 128
      %3392 = vsyncadd [#allocation4], %s3391
      %s3394 = sshll.u32 [#allocation14], 4
      %s3395 = int_to_ptr.vmem [resolvable:$true] %s3394
      %3397 = dma.vmem_to_hbm [thread:$0]  %s3395, 128, %s13, [#allocation4]
    $region85: #{tpu_custom_call.1} parent=1 // pred_fallthru
      _
    // Predicated region
    $region86: #{tpu_custom_call.1} parent=1 // pred_check
      _
    $region87: #{tpu_custom_call.1} parent=1 // pred_check_branch
      %3399 = sbr.rel (0) target = $region89
    $region88: #{tpu_custom_call.1} parent=1 // pred_region
      %3400 = dma.done [#allocation4], 128
    $region89: #{tpu_custom_call.1} parent=1 // pred_fallthru
      _
    %3401 = vsyncpa [#allocation3], 1
    %3402 = vsyncpa [#allocation6], 1
    %3403 = vsyncpa [#allocation9], 1
    %3404 = vsyncpa [#allocation12], 1
    %3405 = vsyncpa [#allocation4], 1

</llo_original>
